<compile_context>
chip_gen: v5e
topology: v5e:2x2
jax: 0.10.0
libtpu: 0.0.40
codegen_flags: <defaults>
</compile_context>

<pallas_src>
import functools

import jax
import jax.numpy as jnp
from jax.experimental import pallas as pl
from jax.experimental.pallas import tpu as pltpu


_LN_EPS = 1e-5  # torch.nn.LayerNorm default eps


# ----------------------------------------------------------------------------
# Kernel bodies
# ----------------------------------------------------------------------------
def _layer_norm(h, gamma, beta):
    # One-pass statistics: E[h] and E[h^2] reduced together (independent
    # reductions -> they can overlap on the XLU); var = E[h^2] - mu^2.
    mu = jnp.mean(h, axis=-1, keepdims=True)
    mu2 = jnp.mean(h * h, axis=-1, keepdims=True)
    var = jnp.maximum(mu2 - mu * mu, 0.0)
    return (h - mu) * jax.lax.rsqrt(var + _LN_EPS) * gamma + beta


def _second_stage(h, w2, b2, g2, be2):
    h = jnp.dot(h.astype(jnp.bfloat16), w2,
                preferred_element_type=jnp.float32) + b2
    return jnp.maximum(_layer_norm(h, g2, be2), 0.0)


def _resblock_skip_kernel(f_out, x_ref, wcat_ref, bcat_ref, g1_ref, be1_ref,
                          w2_ref, b2_ref, g2_ref, be2_ref, o_ref):
    x16 = x_ref[...].astype(jnp.bfloat16)
    # Fused first matmul: x @ [w1 | ws] in a single, wider MXU pass.
    hw = jnp.dot(x16, wcat_ref[...],
                 preferred_element_type=jnp.float32) + bcat_ref[...]
    h = jnp.maximum(_layer_norm(hw[:, :f_out], g1_ref[...], be1_ref[...]), 0.0)
    h = _second_stage(h, w2_ref[...], b2_ref[...], g2_ref[...], be2_ref[...])
    o_ref[...] = (h + hw[:, f_out:]).astype(o_ref.dtype)


def _resblock_identity_kernel(f_out, x_ref, w1_ref, b1_ref, g1_ref, be1_ref,
                              w2_ref, b2_ref, g2_ref, be2_ref, o_ref):
    x = x_ref[...]
    h = jnp.dot(x.astype(jnp.bfloat16), w1_ref[...],
                preferred_element_type=jnp.float32) + b1_ref[...]
    h = jnp.maximum(_layer_norm(h, g1_ref[...], be1_ref[...]), 0.0)
    h = _second_stage(h, w2_ref[...], b2_ref[...], g2_ref[...], be2_ref[...])
    # Identity skip: original (unpadded) feature columns of x, in f32.
    o_ref[...] = (h + x[:, :f_out]).astype(o_ref.dtype)


# ----------------------------------------------------------------------------
# Tiling helpers
# ----------------------------------------------------------------------------
def _round_up(x, m):
    return (x + m - 1) // m * m


def _choose_tile_n(n, f_in_pad, f_out, has_skip):
    """Largest batch tile that fits a conservative VMEM budget (v7x-safe)."""
    wide = 2 * f_out if has_skip else f_out
    # per-row bytes: f32 x tile (x2 dbuf) + f32 out tile (x2 dbuf)
    #              + first-matmul f32 result + f32 intermediates.
    per_row = 4 * (2 * f_in_pad + 2 * f_out + wide + 2 * f_out)
    budget = 24 * 1024 * 1024          # conservative even for v7x (64 MiB phys)
    tile = 128
    for cand in (1024, 512, 256, 128):
        if cand * per_row <= budget:
            tile = cand
            break
    # keep >=4 grid steps (>=2 per TensorCore on megacore parts) when possible
    while tile > 128 and pl.cdiv(n, tile) < 4:
        tile //= 2
    return tile


# ----------------------------------------------------------------------------
# Wrapper: single fused pallas_call, batch-tiled grid, resident bf16 weights.
# ----------------------------------------------------------------------------
def resblock_forward(x, params, *, tile_n=None):
    """x: (N, F_in) f32. params: dict(w1,b1,g1,be1,w2,b2,g2,be2[,ws,bs])."""
    n, f_in = x.shape
    f_out = params["w1"].shape[1]
    has_skip = "ws" in params
    out_dtype = x.dtype

    # --- weights: bf16 for the MXU; biases / LN affine params stay f32 -------
    w1 = params["w1"].astype(jnp.bfloat16)
    w2 = params["w2"].astype(jnp.bfloat16)
    b1 = params["b1"].astype(jnp.float32)
    if has_skip:
        w_first = jnp.concatenate([w1, params["ws"].astype(jnp.bfloat16)], axis=1)
        b_first = jnp.concatenate([b1, params["bs"].astype(jnp.float32)], axis=1)
    else:
        w_first, b_first = w1, b1

    # --- pad contraction dim (f_in) to a lane-dense multiple of 128 ----------
    f_in_pad = _round_up(f_in, 128)
    if f_in_pad != f_in:
        x = jnp.pad(x, ((0, 0), (0, f_in_pad - f_in)))
        w_first = jnp.pad(w_first, ((0, f_in_pad - f_in), (0, 0)))

    # --- batch tiling (no full-extent fallback; pad ragged batches) ----------
    if tile_n is None:
        tile_n = _choose_tile_n(n, f_in_pad, f_out, has_skip)
    n_pad = _round_up(n, tile_n)
    if n_pad != n:
        x = jnp.pad(x, ((0, n_pad - n), (0, 0)))
    grid = (n_pad // tile_n,)

    row_map = lambda i: (i, 0)            # batch-tiled operand / output
    const_map = lambda i: (0, 0)          # weights: same block every grid step

    in_arrays = [x, w_first, b_first,
                 params["g1"].astype(jnp.float32),
                 params["be1"].astype(jnp.float32),
                 w2, params["b2"].astype(jnp.float32),
                 params["g2"].astype(jnp.float32),
                 params["be2"].astype(jnp.float32)]
    in_specs = [pl.BlockSpec((tile_n, f_in_pad), row_map)]
    in_specs += [pl.BlockSpec(a.shape, const_map) for a in in_arrays[1:]]

    kernel = functools.partial(
        _resblock_skip_kernel if has_skip else _resblock_identity_kernel, f_out)

    # --- scheduler / VMEM hints ----------------------------------------------
    flops = 2 * n_pad * (f_in_pad * f_out * (2 if has_skip else 1) + f_out * f_out)
    bytes_accessed = int(sum(a.size * a.dtype.itemsize for a in in_arrays)
                         + n_pad * f_out * 4)
    cost = pl.CostEstimate(flops=int(flops), transcendentals=int(2 * n_pad),
                           bytes_accessed=bytes_accessed)

    wide = 2 * f_out if has_skip else f_out
    tile_bytes = 4 * tile_n * (2 * f_in_pad + 2 * f_out + wide + 2 * f_out)
    weight_bytes = 2 * sum(int(a.size * a.dtype.itemsize) for a in in_arrays[1:])
    vmem_limit = min(max(32 << 20, int(1.5 * (tile_bytes + weight_bytes))), 64 << 20)

    out = pl.pallas_call(
        kernel,
        out_shape=jax.ShapeDtypeStruct((n_pad, f_out), out_dtype),
        grid=grid,
        in_specs=in_specs,
        out_specs=pl.BlockSpec((tile_n, f_out), row_map),
        compiler_params=pltpu.CompilerParams(
            dimension_semantics=("parallel",),
            vmem_limit_bytes=vmem_limit),
        cost_estimate=cost,
    )(*in_arrays)
    return out[:n] if n_pad != n else out


# ----------------------------------------------------------------------------
# Pure-JAX reference (f32) for correctness checking.
# ----------------------------------------------------------------------------
def _reference(x, params):
    def ln(h, g, be):
        mu = h.mean(-1, keepdims=True)
        var = ((h - mu) ** 2).mean(-1, keepdims=True)
        return (h - mu) / jnp.sqrt(var + _LN_EPS) * g + be

    h = jnp.maximum(ln(x @ params["w1"] + params["b1"],
                       params["g1"], params["be1"]), 0.0)
    h = jnp.maximum(ln(h @ params["w2"] + params["b2"],
                       params["g2"], params["be2"]), 0.0)
    skip = (x @ params["ws"] + params["bs"]) if "ws" in params else x
    return h + skip


def _make_params(key, f_in, f_out, with_skip):
    ks = jax.random.split(key, 10)
    p = {
        "w1": 0.1 * jax.random.normal(ks[0], (f_in, f_out), jnp.float32),
        "b1": 0.1 * jax.random.normal(ks[1], (1, f_out), jnp.float32),
        "g1": 1.0 + 0.1 * jax.random.normal(ks[2], (1, f_out), jnp.float32),
        "be1": 0.1 * jax.random.normal(ks[3], (1, f_out), jnp.float32),
        "w2": 0.1 * jax.random.normal(ks[4], (f_out, f_out), jnp.float32),
        "b2": 0.1 * jax.random.normal(ks[5], (1, f_out), jnp.float32),
        "g2": 1.0 + 0.1 * jax.random.normal(ks[6], (1, f_out), jnp.float32),
        "be2": 0.1 * jax.random.normal(ks[7], (1, f_out), jnp.float32),
    }
    if with_skip:
        p["ws"] = 0.1 * jax.random.normal(ks[8], (f_in, f_out), jnp.float32)
        p["bs"] = 0.1 * jax.random.normal(ks[9], (1, f_out), jnp.float32)
    return p


if __name__ == "__main__":
    key = jax.random.PRNGKey(0)
    k_p1, k_x1, k_p2, k_x2 = jax.random.split(key, 4)

    fwd = jax.jit(resblock_forward)

    # bf16 MXU operands -> relax the comparison tolerance vs. the f32 reference.
    ATOL = RTOL = 7.5e-2

    # Case 1: input_feature != output_feature -> Linear skip (fused into matmul 1).
    n, f_in, f_out = 256, 64, 128
    params1 = _make_params(k_p1, f_in, f_out, with_skip=True)
    x1 = jax.random.normal(k_x1, (n, f_in), jnp.float32)
    y1 = fwd(x1, params1)
    jax.block_until_ready(y1)
    y1_ref = _reference(x1, params1)
    assert y1.shape == (n, f_out)
    assert jnp.allclose(y1, y1_ref, atol=ATOL, rtol=RTOL), \
        float(jnp.max(jnp.abs(y1 - y1_ref)))

    # Case 2: input_feature == output_feature -> Identity skip; ragged batch
    # (exercises the zero-padded tail-tile path).
    n2 = 200
    params2 = _make_params(k_p2, f_out, f_out, with_skip=False)
    x2 = jax.random.normal(k_x2, (n2, f_out), jnp.float32)
    y2 = fwd(x2, params2)
    jax.block_until_ready(y2)
    y2_ref = _reference(x2, params2)
    assert y2.shape == (n2, f_out)
    assert jnp.allclose(y2, y2_ref, atol=ATOL, rtol=RTOL), \
        float(jnp.max(jnp.abs(y2 - y2_ref)))

    print("KERNEL_OK")
</pallas_src>

<mosaic_0001>
module attributes {stable_mosaic.version = 11 : i64} {
  func.func @_resblock_skip_kernel(%arg0: i32, %arg1: memref<128x128xf32, #tpu.memory_space<vmem>>, %arg2: memref<128x256xbf16, #tpu.memory_space<vmem>>, %arg3: memref<1x256xf32, #tpu.memory_space<vmem>>, %arg4: memref<1x128xf32, #tpu.memory_space<vmem>>, %arg5: memref<1x128xf32, #tpu.memory_space<vmem>>, %arg6: memref<128x128xbf16, #tpu.memory_space<vmem>>, %arg7: memref<1x128xf32, #tpu.memory_space<vmem>>, %arg8: memref<1x128xf32, #tpu.memory_space<vmem>>, %arg9: memref<1x128xf32, #tpu.memory_space<vmem>>, %arg10: memref<128x128xf32, #tpu.memory_space<vmem>>) attributes {dimension_semantics = [#tpu.dimension_semantics<parallel>], iteration_bounds = array<i64: 2>, scalar_prefetch = 0 : i64, scratch_operands = 0 : i64, tpu.core_type = #tpu.core_type<tc>, window_params = [{transform_indices = @transform_0, window_bounds = array<i64: 128, 128>}, {pipeline_mode = #tpu.pipeline_mode<synchronous>, transform_indices = @transform_1, window_bounds = array<i64: 128, 256>}, {pipeline_mode = #tpu.pipeline_mode<synchronous>, transform_indices = @transform_2, window_bounds = array<i64: 1, 256>}, {pipeline_mode = #tpu.pipeline_mode<synchronous>, transform_indices = @transform_3, window_bounds = array<i64: 1, 128>}, {pipeline_mode = #tpu.pipeline_mode<synchronous>, transform_indices = @transform_4, window_bounds = array<i64: 1, 128>}, {pipeline_mode = #tpu.pipeline_mode<synchronous>, transform_indices = @transform_5, window_bounds = array<i64: 128, 128>}, {pipeline_mode = #tpu.pipeline_mode<synchronous>, transform_indices = @transform_6, window_bounds = array<i64: 1, 128>}, {pipeline_mode = #tpu.pipeline_mode<synchronous>, transform_indices = @transform_7, window_bounds = array<i64: 1, 128>}, {pipeline_mode = #tpu.pipeline_mode<synchronous>, transform_indices = @transform_8, window_bounds = array<i64: 1, 128>}, {transform_indices = @transform_9, window_bounds = array<i64: 128, 128>}]} {
    %c0 = arith.constant 0 : index
    %c0_0 = arith.constant 0 : index
    %0 = vector.load %arg1[%c0, %c0_0] : memref<128x128xf32, #tpu.memory_space<vmem>>, vector<128x128xf32>
    %1 = arith.truncf %0 : vector<128x128xf32> to vector<128x128xbf16>
    %c0_1 = arith.constant 0 : index
    %c0_2 = arith.constant 0 : index
    %2 = vector.load %arg2[%c0_1, %c0_2] : memref<128x256xbf16, #tpu.memory_space<vmem>>, vector<128x256xbf16>
    %cst = arith.constant dense<0.000000e+00> : vector<128x256xf32>
    %3 = tpu.matmul %1, %2, %cst {dimension_numbers = #tpu.dot_dimension_numbers<[1], [0], [0], [1], [0, 0, 1, 1], [], []>} : vector<128x128xbf16>, vector<128x256xbf16>, vector<128x256xf32> -> vector<128x256xf32>
    %c0_3 = arith.constant 0 : index
    %c0_4 = arith.constant 0 : index
    %4 = vector.load %arg3[%c0_3, %c0_4] : memref<1x256xf32, #tpu.memory_space<vmem>>, vector<1x256xf32>
    %5 = vector.broadcast %4 : vector<1x256xf32> to vector<128x256xf32>
    %6 = arith.addf %3, %5 : vector<128x256xf32>
    %7 = vector.extract_strided_slice %6 {offsets = [0, 0], sizes = [128, 128], strides = [1, 1]} : vector<128x256xf32> to vector<128x128xf32>
    %c0_5 = arith.constant 0 : index
    %c0_6 = arith.constant 0 : index
    %8 = vector.load %arg4[%c0_5, %c0_6] : memref<1x128xf32, #tpu.memory_space<vmem>>, vector<1x128xf32>
    %c0_7 = arith.constant 0 : index
    %c0_8 = arith.constant 0 : index
    %9 = vector.load %arg5[%c0_7, %c0_8] : memref<1x128xf32, #tpu.memory_space<vmem>>, vector<1x128xf32>
    %cst_9 = arith.constant dense<0.000000e+00> : vector<128xf32>
    %10 = vector.multi_reduction <add>, %7, %cst_9 [1] : vector<128x128xf32> to vector<128xf32>
    %11 = vector.shape_cast %10 : vector<128xf32> to vector<128x1xf32>
    %cst_10 = arith.constant 1.280000e+02 : f32
    %12 = vector.broadcast %cst_10 : f32 to vector<128x1xf32>
    %13 = arith.divf %11, %12 : vector<128x1xf32>
    %14 = arith.mulf %7, %7 : vector<128x128xf32>
    %cst_11 = arith.constant dense<0.000000e+00> : vector<128xf32>
    %15 = vector.multi_reduction <add>, %14, %cst_11 [1] : vector<128x128xf32> to vector<128xf32>
    %16 = vector.shape_cast %15 : vector<128xf32> to vector<128x1xf32>
    %cst_12 = arith.constant 1.280000e+02 : f32
    %17 = vector.broadcast %cst_12 : f32 to vector<128x1xf32>
    %18 = arith.divf %16, %17 : vector<128x1xf32>
    %19 = arith.mulf %13, %13 : vector<128x1xf32>
    %20 = arith.subf %18, %19 : vector<128x1xf32>
    %cst_13 = arith.constant 0.000000e+00 : f32
    %21 = vector.broadcast %cst_13 : f32 to vector<128x1xf32>
    %22 = arith.maximumf %20, %21 : vector<128x1xf32>
    %23 = vector.broadcast %13 : vector<128x1xf32> to vector<128x128xf32>
    %24 = arith.subf %7, %23 : vector<128x128xf32>
    %cst_14 = arith.constant 9.99999974E-6 : f32
    %25 = vector.broadcast %cst_14 : f32 to vector<128x1xf32>
    %26 = arith.addf %22, %25 : vector<128x1xf32>
    %27 = math.rsqrt %26 : vector<128x1xf32>
    %28 = vector.broadcast %27 : vector<128x1xf32> to vector<128x128xf32>
    %29 = arith.mulf %24, %28 : vector<128x128xf32>
    %30 = vector.broadcast %8 : vector<1x128xf32> to vector<128x128xf32>
    %31 = arith.mulf %29, %30 : vector<128x128xf32>
    %32 = vector.broadcast %9 : vector<1x128xf32> to vector<128x128xf32>
    %33 = arith.addf %31, %32 : vector<128x128xf32>
    %cst_15 = arith.constant 0.000000e+00 : f32
    %34 = vector.broadcast %cst_15 : f32 to vector<128x128xf32>
    %35 = arith.maximumf %33, %34 : vector<128x128xf32>
    %c0_16 = arith.constant 0 : index
    %c0_17 = arith.constant 0 : index
    %36 = vector.load %arg6[%c0_16, %c0_17] : memref<128x128xbf16, #tpu.memory_space<vmem>>, vector<128x128xbf16>
    %c0_18 = arith.constant 0 : index
    %c0_19 = arith.constant 0 : index
    %37 = vector.load %arg7[%c0_18, %c0_19] : memref<1x128xf32, #tpu.memory_space<vmem>>, vector<1x128xf32>
    %c0_20 = arith.constant 0 : index
    %c0_21 = arith.constant 0 : index
    %38 = vector.load %arg8[%c0_20, %c0_21] : memref<1x128xf32, #tpu.memory_space<vmem>>, vector<1x128xf32>
    %c0_22 = arith.constant 0 : index
    %c0_23 = arith.constant 0 : index
    %39 = vector.load %arg9[%c0_22, %c0_23] : memref<1x128xf32, #tpu.memory_space<vmem>>, vector<1x128xf32>
    %40 = arith.truncf %35 : vector<128x128xf32> to vector<128x128xbf16>
    %cst_24 = arith.constant dense<0.000000e+00> : vector<128x128xf32>
    %41 = tpu.matmul %40, %36, %cst_24 {dimension_numbers = #tpu.dot_dimension_numbers<[1], [0], [0], [1], [0, 0, 1, 1], [], []>} : vector<128x128xbf16>, vector<128x128xbf16>, vector<128x128xf32> -> vector<128x128xf32>
    %42 = vector.broadcast %37 : vector<1x128xf32> to vector<128x128xf32>
    %43 = arith.addf %41, %42 : vector<128x128xf32>
    %cst_25 = arith.constant dense<0.000000e+00> : vector<128xf32>
    %44 = vector.multi_reduction <add>, %43, %cst_25 [1] : vector<128x128xf32> to vector<128xf32>
    %45 = vector.shape_cast %44 : vector<128xf32> to vector<128x1xf32>
    %cst_26 = arith.constant 1.280000e+02 : f32
    %46 = vector.broadcast %cst_26 : f32 to vector<128x1xf32>
    %47 = arith.divf %45, %46 : vector<128x1xf32>
    %48 = arith.mulf %43, %43 : vector<128x128xf32>
    %cst_27 = arith.constant dense<0.000000e+00> : vector<128xf32>
    %49 = vector.multi_reduction <add>, %48, %cst_27 [1] : vector<128x128xf32> to vector<128xf32>
    %50 = vector.shape_cast %49 : vector<128xf32> to vector<128x1xf32>
    %cst_28 = arith.constant 1.280000e+02 : f32
    %51 = vector.broadcast %cst_28 : f32 to vector<128x1xf32>
    %52 = arith.divf %50, %51 : vector<128x1xf32>
    %53 = arith.mulf %47, %47 : vector<128x1xf32>
    %54 = arith.subf %52, %53 : vector<128x1xf32>
    %cst_29 = arith.constant 0.000000e+00 : f32
    %55 = vector.broadcast %cst_29 : f32 to vector<128x1xf32>
    %56 = arith.maximumf %54, %55 : vector<128x1xf32>
    %57 = vector.broadcast %47 : vector<128x1xf32> to vector<128x128xf32>
    %58 = arith.subf %43, %57 : vector<128x128xf32>
    %cst_30 = arith.constant 9.99999974E-6 : f32
    %59 = vector.broadcast %cst_30 : f32 to vector<128x1xf32>
    %60 = arith.addf %56, %59 : vector<128x1xf32>
    %61 = math.rsqrt %60 : vector<128x1xf32>
    %62 = vector.broadcast %61 : vector<128x1xf32> to vector<128x128xf32>
    %63 = arith.mulf %58, %62 : vector<128x128xf32>
    %64 = vector.broadcast %38 : vector<1x128xf32> to vector<128x128xf32>
    %65 = arith.mulf %63, %64 : vector<128x128xf32>
    %66 = vector.broadcast %39 : vector<1x128xf32> to vector<128x128xf32>
    %67 = arith.addf %65, %66 : vector<128x128xf32>
    %cst_31 = arith.constant 0.000000e+00 : f32
    %68 = vector.broadcast %cst_31 : f32 to vector<128x128xf32>
    %69 = arith.maximumf %67, %68 : vector<128x128xf32>
    %70 = vector.extract_strided_slice %6 {offsets = [0, 128], sizes = [128, 128], strides = [1, 1]} : vector<128x256xf32> to vector<128x128xf32>
    %71 = arith.addf %69, %70 : vector<128x128xf32>
    %c0_32 = arith.constant 0 : index
    %c0_33 = arith.constant 0 : index
    %72 = vector.load %arg10[%c0_32, %c0_33] : memref<128x128xf32, #tpu.memory_space<vmem>>, vector<128x128xf32>
    tpu.vector_store %arg10[%c0_32, %c0_33], %71 {strides = array<i32>} : memref<128x128xf32, #tpu.memory_space<vmem>>, vector<128x128xf32>,
    return
  }
  func.func @transform_0(%arg0: i32) -> (i32, i32) {
    %c0_i32 = arith.constant 0 : i32
    %c0_i32_0 = arith.constant 0 : i32
    return %arg0, %c0_i32 : i32, i32
  }
  func.func @transform_1(%arg0: i32) -> (i32, i32) {
    %c0_i32 = arith.constant 0 : i32
    %c0_i32_0 = arith.constant 0 : i32
    %c0_i32_1 = arith.constant 0 : i32
    return %c0_i32, %c0_i32_0 : i32, i32
  }
  func.func @transform_2(%arg0: i32) -> (i32, i32) {
    %c0_i32 = arith.constant 0 : i32
    %c0_i32_0 = arith.constant 0 : i32
    %c0_i32_1 = arith.constant 0 : i32
    return %c0_i32, %c0_i32_0 : i32, i32
  }
  func.func @transform_3(%arg0: i32) -> (i32, i32) {
    %c0_i32 = arith.constant 0 : i32
    %c0_i32_0 = arith.constant 0 : i32
    %c0_i32_1 = arith.constant 0 : i32
    return %c0_i32, %c0_i32_0 : i32, i32
  }
  func.func @transform_4(%arg0: i32) -> (i32, i32) {
    %c0_i32 = arith.constant 0 : i32
    %c0_i32_0 = arith.constant 0 : i32
    %c0_i32_1 = arith.constant 0 : i32
    return %c0_i32, %c0_i32_0 : i32, i32
  }
  func.func @transform_5(%arg0: i32) -> (i32, i32) {
    %c0_i32 = arith.constant 0 : i32
    %c0_i32_0 = arith.constant 0 : i32
    %c0_i32_1 = arith.constant 0 : i32
    return %c0_i32, %c0_i32_0 : i32, i32
  }
  func.func @transform_6(%arg0: i32) -> (i32, i32) {
    %c0_i32 = arith.constant 0 : i32
    %c0_i32_0 = arith.constant 0 : i32
    %c0_i32_1 = arith.constant 0 : i32
    return %c0_i32, %c0_i32_0 : i32, i32
  }
  func.func @transform_7(%arg0: i32) -> (i32, i32) {
    %c0_i32 = arith.constant 0 : i32
    %c0_i32_0 = arith.constant 0 : i32
    %c0_i32_1 = arith.constant 0 : i32
    return %c0_i32, %c0_i32_0 : i32, i32
  }
  func.func @transform_8(%arg0: i32) -> (i32, i32) {
    %c0_i32 = arith.constant 0 : i32
    %c0_i32_0 = arith.constant 0 : i32
    %c0_i32_1 = arith.constant 0 : i32
    return %c0_i32, %c0_i32_0 : i32, i32
  }
  func.func @transform_9(%arg0: i32) -> (i32, i32) {
    %c0_i32 = arith.constant 0 : i32
    %c0_i32_0 = arith.constant 0 : i32
    return %arg0, %c0_i32 : i32, i32
  }
}

</mosaic_0001>

<llo_original>
// kernel: resblock_forward.1
$region0: #{resblock_forward.1}
  #allocation0 [shape = 'u32[]', space=smem, size = 0x4, offset = 0x4, fixed_abs, tag = 'smem constant byte address 0x4 - core index']
  #allocation1 [shape = 'u32[72,128]{1,0:T(1,128)}', space=vmem, size = 0x9000, scoped, tag = 'internal scratch']
  %s0 = inlined_call_operand.vmem [shape: f32[256,128], index: 0, kind: input, shape index: {}]
  %s1 = inlined_call_operand.vmem [shape: bf16[128,256], index: 1, kind: input, shape index: {}]
  %s2 = inlined_call_operand.vmem [shape: f32[1,256], index: 2, kind: input, shape index: {}]
  %s3 = inlined_call_operand.vmem [shape: f32[1,128], index: 3, kind: input, shape index: {}]
  %s4 = inlined_call_operand.vmem [shape: f32[1,128], index: 4, kind: input, shape index: {}]
  %s5 = inlined_call_operand.vmem [shape: bf16[128,128], index: 5, kind: input, shape index: {}]
  %s6 = inlined_call_operand.vmem [shape: f32[1,128], index: 6, kind: input, shape index: {}]
  %s7 = inlined_call_operand.vmem [shape: f32[1,128], index: 7, kind: input, shape index: {}]
  %s8 = inlined_call_operand.vmem [shape: f32[1,128], index: 8, kind: input, shape index: {}]
  %s9 = inlined_call_operand.hbm [shape: f32[256,128], index: 9, kind: output, shape index: {}]
  %s10 = sld [smem:[#allocation0]]
  $region69: #{resblock_forward.1} parent=0
    _
  %s12 = ssub.s32 1, %s10
  %s13 = scalar_select 0, %s12, %s10
  $region1: #{resblock_forward.1} parent=0
    #allocation2 [shape = 'u8[131072]{0}', space=vmem, size = 0x20000, scoped, tag = 'output window, operand 0']
    #allocation3 [shape = 's32[2]{0}', space=sflag, size = 0x8, scoped, tag = 'scoped memory for resblock_forward.1']
    %14 = vsyncpa [#allocation3], 0
    %s15 = scalar_lea.sflag [#allocation3], 1
    %16 = vsyncpa %s15, 0
    loop: start=0, step=1, limit=4
    $region2: #{resblock_forward.1} parent=1 // loop_pre_header
      _
    $region3: #{resblock_forward.1} parent=1 // loop_header
      %s18 = sphi 0, %s22
      %p19 = scmp.ge.s32.totalorder %s18, 4
      %s28 = sphi 0, %s30
      %s31 = sphi 0, %s28
      %s32 = sphi 0, %s31
      %s48 = sphi 0, %s32
      %s52 = sphi 0, %s52
      %s54 = sphi 0, %s52
      %s55 = sphi 0, %s54
      %s69 = sphi 0, %s55
      %s73 = sphi 0, %s73
      %s75 = sphi 0, %s73
      %s76 = sphi 0, %s75
      %s90 = sphi 0, %s76
      %s94 = sphi 0, %s94
      %s96 = sphi 0, %s94
      %s97 = sphi 0, %s96
      %s111 = sphi 0, %s97
      %s115 = sphi 0, %s115
      %s117 = sphi 0, %s115
      %s118 = sphi 0, %s117
      %s132 = sphi 0, %s118
      %s136 = sphi 0, %s136
      %s138 = sphi 0, %s136
      %s139 = sphi 0, %s138
      %s153 = sphi 0, %s139
      %s157 = sphi 0, %s157
      %s159 = sphi 0, %s157
      %s160 = sphi 0, %s159
      %s174 = sphi 0, %s160
      %s178 = sphi 0, %s178
      %s180 = sphi 0, %s178
      %s181 = sphi 0, %s180
      %s195 = sphi 0, %s181
      %s199 = sphi 0, %s199
      %s201 = sphi 0, %s199
      %s202 = sphi 0, %s201
      %s216 = sphi 0, %s202
      %s222 = sphi 0, %s224
      %s225 = sphi 0, %s222
      %s226 = sphi 0, %s225
      %s242 = sphi 0, %s226
    $region4: #{resblock_forward.1} parent=1 // loop_header_branch
      %21 = sbr.rel (%p19) target = $region8
    $region5: #{resblock_forward.1} parent=1 // loop_body
      %s23 = ssub.s32 %s18, 1
      %s24 = ssub.s32 %s18, 2
      %s25 = sadd.s32 %s18, 1
      %s26 = ssub.s32 %s18, %s25
      %p27 = scmp.eq.s32.totalorder %s26, 0
      %s29 = sadd.s32 %s28, 1
      %s30 = scalar_select %p27, %s28, %s29
      %p33 = pneg %p27
      %p34 = scmp.eq.s32.totalorder %s18, 1
      %p35 = por %p33, %p34
      %p36 = scmp.ne.s32.totalorder %s28, %s31
      %p37 = scmp.eq.s32.totalorder %s18, 0
      %p38 = por %p36, %p37
      %p39 = scmp.ne.s32.totalorder %s28, %s31
      %p40 = scmp.eq.s32.totalorder %s23, 1
      %p41 = por %p39, %p40
      %p42 = scmp.ne.s32.totalorder %s31, %s32
      %p43 = scmp.eq.s32.totalorder %s23, 0
      %p44 = por %p42, %p43
      %p45 = scmp.ne.s32.totalorder %s31, %s32
      %p46 = scmp.eq.s32.totalorder %s24, 1
      %p47 = por %p45, %p46
      %p49 = scmp.ne.s32.totalorder %s32, %s48
      %p50 = scmp.eq.s32.totalorder %s24, 0
      %p51 = por %p49, %p50
      %s53 = sadd.s32 %s52, 1
      %p56 = scmp.eq.s32.totalorder %s18, 1
      %p57 = scmp.ne.s32.totalorder %s52, %s54
      %p58 = scmp.eq.s32.totalorder %s18, 0
      %p59 = por %p57, %p58
      %p60 = scmp.ne.s32.totalorder %s52, %s54
      %p61 = scmp.eq.s32.totalorder %s23, 1
      %p62 = por %p60, %p61
      %p63 = scmp.ne.s32.totalorder %s54, %s55
      %p64 = scmp.eq.s32.totalorder %s23, 0
      %p65 = por %p63, %p64
      %p66 = scmp.ne.s32.totalorder %s54, %s55
      %p67 = scmp.eq.s32.totalorder %s24, 1
      %p68 = por %p66, %p67
      %p70 = scmp.ne.s32.totalorder %s55, %s69
      %p71 = scmp.eq.s32.totalorder %s24, 0
      %p72 = por %p70, %p71
      %s74 = sadd.s32 %s73, 1
      %p77 = scmp.eq.s32.totalorder %s18, 1
      %p78 = scmp.ne.s32.totalorder %s73, %s75
      %p79 = scmp.eq.s32.totalorder %s18, 0
      %p80 = por %p78, %p79
      %p81 = scmp.ne.s32.totalorder %s73, %s75
      %p82 = scmp.eq.s32.totalorder %s23, 1
      %p83 = por %p81, %p82
      %p84 = scmp.ne.s32.totalorder %s75, %s76
      %p85 = scmp.eq.s32.totalorder %s23, 0
      %p86 = por %p84, %p85
      %p87 = scmp.ne.s32.totalorder %s75, %s76
      %p88 = scmp.eq.s32.totalorder %s24, 1
      %p89 = por %p87, %p88
      %p91 = scmp.ne.s32.totalorder %s76, %s90
      %p92 = scmp.eq.s32.totalorder %s24, 0
      %p93 = por %p91, %p92
      %s95 = sadd.s32 %s94, 1
      %p98 = scmp.eq.s32.totalorder %s18, 1
      %p99 = scmp.ne.s32.totalorder %s94, %s96
      %p100 = scmp.eq.s32.totalorder %s18, 0
      %p101 = por %p99, %p100
      %p102 = scmp.ne.s32.totalorder %s94, %s96
      %p103 = scmp.eq.s32.totalorder %s23, 1
      %p104 = por %p102, %p103
      %p105 = scmp.ne.s32.totalorder %s96, %s97
      %p106 = scmp.eq.s32.totalorder %s23, 0
      %p107 = por %p105, %p106
      %p108 = scmp.ne.s32.totalorder %s96, %s97
      %p109 = scmp.eq.s32.totalorder %s24, 1
      %p110 = por %p108, %p109
      %p112 = scmp.ne.s32.totalorder %s97, %s111
      %p113 = scmp.eq.s32.totalorder %s24, 0
      %p114 = por %p112, %p113
      %s116 = sadd.s32 %s115, 1
      %p119 = scmp.eq.s32.totalorder %s18, 1
      %p120 = scmp.ne.s32.totalorder %s115, %s117
      %p121 = scmp.eq.s32.totalorder %s18, 0
      %p122 = por %p120, %p121
      %p123 = scmp.ne.s32.totalorder %s115, %s117
      %p124 = scmp.eq.s32.totalorder %s23, 1
      %p125 = por %p123, %p124
      %p126 = scmp.ne.s32.totalorder %s117, %s118
      %p127 = scmp.eq.s32.totalorder %s23, 0
      %p128 = por %p126, %p127
      %p129 = scmp.ne.s32.totalorder %s117, %s118
      %p130 = scmp.eq.s32.totalorder %s24, 1
      %p131 = por %p129, %p130
      %p133 = scmp.ne.s32.totalorder %s118, %s132
      %p134 = scmp.eq.s32.totalorder %s24, 0
      %p135 = por %p133, %p134
      %s137 = sadd.s32 %s136, 1
      %p140 = scmp.eq.s32.totalorder %s18, 1
      %p141 = scmp.ne.s32.totalorder %s136, %s138
      %p142 = scmp.eq.s32.totalorder %s18, 0
      %p143 = por %p141, %p142
      %p144 = scmp.ne.s32.totalorder %s136, %s138
      %p145 = scmp.eq.s32.totalorder %s23, 1
      %p146 = por %p144, %p145
      %p147 = scmp.ne.s32.totalorder %s138, %s139
      %p148 = scmp.eq.s32.totalorder %s23, 0
      %p149 = por %p147, %p148
      %p150 = scmp.ne.s32.totalorder %s138, %s139
      %p151 = scmp.eq.s32.totalorder %s24, 1
      %p152 = por %p150, %p151
      %p154 = scmp.ne.s32.totalorder %s139, %s153
      %p155 = scmp.eq.s32.totalorder %s24, 0
      %p156 = por %p154, %p155
      %s158 = sadd.s32 %s157, 1
      %p161 = scmp.eq.s32.totalorder %s18, 1
      %p162 = scmp.ne.s32.totalorder %s157, %s159
      %p163 = scmp.eq.s32.totalorder %s18, 0
      %p164 = por %p162, %p163
      %p165 = scmp.ne.s32.totalorder %s157, %s159
      %p166 = scmp.eq.s32.totalorder %s23, 1
      %p167 = por %p165, %p166
      %p168 = scmp.ne.s32.totalorder %s159, %s160
      %p169 = scmp.eq.s32.totalorder %s23, 0
      %p170 = por %p168, %p169
      %p171 = scmp.ne.s32.totalorder %s159, %s160
      %p172 = scmp.eq.s32.totalorder %s24, 1
      %p173 = por %p171, %p172
      %p175 = scmp.ne.s32.totalorder %s160, %s174
      %p176 = scmp.eq.s32.totalorder %s24, 0
      %p177 = por %p175, %p176
      %s179 = sadd.s32 %s178, 1
      %p182 = scmp.eq.s32.totalorder %s18, 1
      %p183 = scmp.ne.s32.totalorder %s178, %s180
      %p184 = scmp.eq.s32.totalorder %s18, 0
      %p185 = por %p183, %p184
      %p186 = scmp.ne.s32.totalorder %s178, %s180
      %p187 = scmp.eq.s32.totalorder %s23, 1
      %p188 = por %p186, %p187
      %p189 = scmp.ne.s32.totalorder %s180, %s181
      %p190 = scmp.eq.s32.totalorder %s23, 0
      %p191 = por %p189, %p190
      %p192 = scmp.ne.s32.totalorder %s180, %s181
      %p193 = scmp.eq.s32.totalorder %s24, 1
      %p194 = por %p192, %p193
      %p196 = scmp.ne.s32.totalorder %s181, %s195
      %p197 = scmp.eq.s32.totalorder %s24, 0
      %p198 = por %p196, %p197
      %s200 = sadd.s32 %s199, 1
      %p203 = scmp.eq.s32.totalorder %s18, 1
      %p204 = scmp.ne.s32.totalorder %s199, %s201
      %p205 = scmp.eq.s32.totalorder %s18, 0
      %p206 = por %p204, %p205
      %p207 = scmp.ne.s32.totalorder %s199, %s201
      %p208 = scmp.eq.s32.totalorder %s23, 1
      %p209 = por %p207, %p208
      %p210 = scmp.ne.s32.totalorder %s201, %s202
      %p211 = scmp.eq.s32.totalorder %s23, 0
      %p212 = por %p210, %p211
      %p213 = scmp.ne.s32.totalorder %s201, %s202
      %p214 = scmp.eq.s32.totalorder %s24, 1
      %p215 = por %p213, %p214
      %p217 = scmp.ne.s32.totalorder %s202, %s216
      %p218 = scmp.eq.s32.totalorder %s24, 0
      %p219 = por %p217, %p218
      %s220 = ssub.s32 %s18, %s25
      %p221 = scmp.eq.s32.totalorder %s220, 0
      %s223 = sadd.s32 %s222, 1
      %s224 = scalar_select %p221, %s222, %s223
      %p227 = pneg %p221
      %p228 = scmp.eq.s32.totalorder %s18, 1
      %p229 = por %p227, %p228
      %p230 = scmp.ne.s32.totalorder %s222, %s225
      %p231 = scmp.eq.s32.totalorder %s18, 0
      %p232 = por %p230, %p231
      %p233 = scmp.ne.s32.totalorder %s222, %s225
      %p234 = scmp.eq.s32.totalorder %s23, 1
      %p235 = por %p233, %p234
      %p236 = scmp.ne.s32.totalorder %s225, %s226
      %p237 = scmp.eq.s32.totalorder %s23, 0
      %p238 = por %p236, %p237
      %p239 = scmp.ne.s32.totalorder %s225, %s226
      %p240 = scmp.eq.s32.totalorder %s24, 1
      %p241 = por %p239, %p240
      %p243 = scmp.ne.s32.totalorder %s226, %s242
      %p244 = scmp.eq.s32.totalorder %s24, 0
      %p245 = por %p243, %p244
      %p246 = scmp.le.s32.totalorder 1, %s18
      %p247 = scmp.lt.s32.totalorder %s18, 3
      %p248 = pnand %p246, %p247
      %p249 = pneg %p248
      // Predicated region
      $region9: #{resblock_forward.1} parent=5 // pred_check
        _
      $region10: #{resblock_forward.1} parent=5 // pred_check_branch
        %251 = sbr.rel (%p248) target = $region12
      $region11: #{resblock_forward.1} parent=5 // pred_region
        %s252 = ssub.s32 %s18, 1
        // Predicated region
        $region13: #{resblock_forward.1} parent=11 // pred_check
          %p253 = pneg %p65
        $region14: #{resblock_forward.1} parent=11 // pred_check_branch
          %255 = sbr.rel (%p253) target = $region16
        $region15: #{resblock_forward.1} parent=11 // pred_region
          _
        $region16: #{resblock_forward.1} parent=11 // pred_fallthru
          _
        // Predicated region
        $region17: #{resblock_forward.1} parent=11 // pred_check
          %p256 = pneg %p86
        $region18: #{resblock_forward.1} parent=11 // pred_check_branch
          %258 = sbr.rel (%p256) target = $region20
        $region19: #{resblock_forward.1} parent=11 // pred_region
          _
        $region20: #{resblock_forward.1} parent=11 // pred_fallthru
          _
        // Predicated region
        $region21: #{resblock_forward.1} parent=11 // pred_check
          %p259 = pneg %p107
        $region22: #{resblock_forward.1} parent=11 // pred_check_branch
          %261 = sbr.rel (%p259) target = $region24
        $region23: #{resblock_forward.1} parent=11 // pred_region
          _
        $region24: #{resblock_forward.1} parent=11 // pred_fallthru
          _
        // Predicated region
        $region25: #{resblock_forward.1} parent=11 // pred_check
          %p262 = pneg %p128
        $region26: #{resblock_forward.1} parent=11 // pred_check_branch
          %264 = sbr.rel (%p262) target = $region28
        $region27: #{resblock_forward.1} parent=11 // pred_region
          _
        $region28: #{resblock_forward.1} parent=11 // pred_fallthru
          _
        // Predicated region
        $region29: #{resblock_forward.1} parent=11 // pred_check
          %p265 = pneg %p149
        $region30: #{resblock_forward.1} parent=11 // pred_check_branch
          %267 = sbr.rel (%p265) target = $region32
        $region31: #{resblock_forward.1} parent=11 // pred_region
          _
        $region32: #{resblock_forward.1} parent=11 // pred_fallthru
          _
        // Predicated region
        $region33: #{resblock_forward.1} parent=11 // pred_check
          %p268 = pneg %p170
        $region34: #{resblock_forward.1} parent=11 // pred_check_branch
          %270 = sbr.rel (%p268) target = $region36
        $region35: #{resblock_forward.1} parent=11 // pred_region
          _
        $region36: #{resblock_forward.1} parent=11 // pred_fallthru
          _
        // Predicated region
        $region37: #{resblock_forward.1} parent=11 // pred_check
          %p271 = pneg %p191
        $region38: #{resblock_forward.1} parent=11 // pred_check_branch
          %273 = sbr.rel (%p271) target = $region40
        $region39: #{resblock_forward.1} parent=11 // pred_region
          _
        $region40: #{resblock_forward.1} parent=11 // pred_fallthru
          _
        // Predicated region
        $region41: #{resblock_forward.1} parent=11 // pred_check
          %p274 = pneg %p212
        $region42: #{resblock_forward.1} parent=11 // pred_check_branch
          %276 = sbr.rel (%p274) target = $region44
        $region43: #{resblock_forward.1} parent=11 // pred_region
          _
        $region44: #{resblock_forward.1} parent=11 // pred_fallthru
          _
      $region12: #{resblock_forward.1} parent=5 // pred_fallthru
        _
      %p277 = scmp.lt.s32.totalorder %s18, 2
      // Predicated region
      $region45: #{resblock_forward.1} parent=5 // pred_check
        %p278 = pneg %p277
      $region46: #{resblock_forward.1} parent=5 // pred_check_branch
        %280 = sbr.rel (%p278) target = $region48
      $region47: #{resblock_forward.1} parent=5 // pred_region
        // Predicated region
        $region49: #{resblock_forward.1} parent=47 // pred_check
          %p281 = pneg %p38
        $region50: #{resblock_forward.1} parent=47 // pred_check_branch
          %283 = sbr.rel (%p281) target = $region52
        $region51: #{resblock_forward.1} parent=47 // pred_region
          %s284 = smul.u32 16, %s18
          %p285 = scmp.lt.s32.totalorder %s284, 31
          %s286 = scalar_select %p285, %s284, 31
          %s287 = smul.addr %s286, 8
          %s288 = scalar_lea.vmem %s0, %s287
          %s289 = smul.u32 16, %s18
        $region52: #{resblock_forward.1} parent=47 // pred_fallthru
          _
      $region48: #{resblock_forward.1} parent=5 // pred_fallthru
        _
      %p290 = scmp.le.s32.totalorder 1, %s18
      %p291 = scmp.lt.s32.totalorder %s18, 3
      %p292 = pnand %p290, %p291
      %p293 = pneg %p292
      // Predicated region
      $region53: #{resblock_forward.1} parent=5 // pred_check
        _
      $region54: #{resblock_forward.1} parent=5 // pred_check_branch
        %295 = sbr.rel (%p292) target = $region56
      $region55: #{resblock_forward.1} parent=5 // pred_region
        %s296 = ssub.s32 %s18, 1
        %s297 = smul.u32 16, %s23
        %p298 = scmp.lt.s32.totalorder %s297, 31
        %s299 = scalar_select %p298, %s297, 31
        %s300 = smul.addr %s299, 8
        %s301 = scalar_lea.vmem %s0, %s300
        %p302 = pneg %p44
        %p303 = pneg %p41
        %p304 = pneg %p65
        %p305 = pneg %p62
        %p306 = pneg %p86
        %p307 = pneg %p83
        %p308 = pneg %p107
        %p309 = pneg %p104
        %p310 = pneg %p128
        %p311 = pneg %p125
        %p312 = pneg %p149
        %p313 = pneg %p146
        %p314 = pneg %p170
        %p315 = pneg %p167
        %p316 = pneg %p191
        %p317 = pneg %p188
        %p318 = pneg %p212
        %p319 = pneg %p209
        %p320 = pneg %p238
        %p321 = pneg %p235
        %s322 = sand.u32 %s225, 1
        %s323 = scalar_lea.sflag [#allocation3], %s322
        %s324 = sand.u32 %s225, 1
        %s325 = smul.addr %s324, 128
        %s326 = scalar_lea.vmem [#allocation2], %s325
        %s327 = smul.u32 16, %s23
        %p328 = scmp.lt.s32.totalorder %s327, 31
        %s329 = scalar_select %p328, %s327, 31
        %s330 = smul.addr %s329, 8
        %s331 = scalar_lea.vmem %s0, %s330
        %s332 = smul.u32 16, %s23
        %s333 = smul.u32 16, %s23
        %v334 = vld [vmem:[%s331] sm:$0xff]
        %v335 = vld [vmem:[%s331 + $0x8] sm:$0xff]
        %v336 = vld [vmem:[%s331 + $0x10] sm:$0xff]
        %v337 = vld [vmem:[%s331 + $0x18] sm:$0xff]
        %v338 = vld [vmem:[%s331 + $0x20] sm:$0xff]
        %v339 = vld [vmem:[%s331 + $0x28] sm:$0xff]
        %v340 = vld [vmem:[%s331 + $0x30] sm:$0xff]
        %v341 = vld [vmem:[%s331 + $0x38] sm:$0xff]
        %v342 = vld [vmem:[%s331 + $0x40] sm:$0xff]
        %v343 = vld [vmem:[%s331 + $0x48] sm:$0xff]
        %v344 = vld [vmem:[%s331 + $0x50] sm:$0xff]
        %v345 = vld [vmem:[%s331 + $0x58] sm:$0xff]
        %v346 = vld [vmem:[%s331 + $0x60] sm:$0xff]
        %v347 = vld [vmem:[%s331 + $0x68] sm:$0xff]
        %v348 = vld [vmem:[%s331 + $0x70] sm:$0xff]
        %v349 = vld [vmem:[%s331 + $0x78] sm:$0xff]
        %v350 = vpack.c.bf16 %v335, %v334
        %v351 = vpack.c.bf16 %v337, %v336
        %v352 = vpack.c.bf16 %v339, %v338
        %v353 = vpack.c.bf16 %v341, %v340
        %v354 = vpack.c.bf16 %v343, %v342
        %v355 = vpack.c.bf16 %v345, %v344
        %v356 = vpack.c.bf16 %v347, %v346
        %v357 = vpack.c.bf16 %v349, %v348
        %v358 = vld [vmem:[%s1] sm:$0xff]
        %v359 = vld [vmem:[%s1 + $0x8] sm:$0xff]
        %v360 = vld [vmem:[%s1 + $0x10] sm:$0xff]
        %v361 = vld [vmem:[%s1 + $0x18] sm:$0xff]
        %v362 = vld [vmem:[%s1 + $0x20] sm:$0xff]
        %v363 = vld [vmem:[%s1 + $0x28] sm:$0xff]
        %v364 = vld [vmem:[%s1 + $0x30] sm:$0xff]
        %v365 = vld [vmem:[%s1 + $0x38] sm:$0xff]
        %v366 = vld [vmem:[%s1 + $0x40] sm:$0xff]
        %v367 = vld [vmem:[%s1 + $0x48] sm:$0xff]
        %v368 = vld [vmem:[%s1 + $0x50] sm:$0xff]
        %v369 = vld [vmem:[%s1 + $0x58] sm:$0xff]
        %v370 = vld [vmem:[%s1 + $0x60] sm:$0xff]
        %v371 = vld [vmem:[%s1 + $0x68] sm:$0xff]
        %v372 = vld [vmem:[%s1 + $0x70] sm:$0xff]
        %v373 = vld [vmem:[%s1 + $0x78] sm:$0xff]
        %v374 = vld [vmem:[%s2] sm:$0x3]
        %v376 = vperm.slane %v374, 0
        %v377 = vperm.slane %v374, 1
        %v396 = vunpack.c.l.b16 %v358
        %v397 = vunpack.c.h.b16 %v358
        %v398 = vunpack.c.l.b16 %v359
        %v399 = vunpack.c.h.b16 %v359
        %v400 = vunpack.c.l.b16 %v360
        %v401 = vunpack.c.h.b16 %v360
        %v402 = vunpack.c.l.b16 %v361
        %v403 = vunpack.c.h.b16 %v361
        %v404 = vunpack.c.l.b16 %v362
        %v405 = vunpack.c.h.b16 %v362
        %v406 = vunpack.c.l.b16 %v363
        %v407 = vunpack.c.h.b16 %v363
        %v408 = vunpack.c.l.b16 %v364
        %v409 = vunpack.c.h.b16 %v364
        %v410 = vunpack.c.l.b16 %v365
        %v411 = vunpack.c.h.b16 %v365
        %v412 = vunpack.c.l.b16 %v366
        %v413 = vunpack.c.h.b16 %v366
        %v414 = vunpack.c.l.b16 %v367
        %v415 = vunpack.c.h.b16 %v367
        %v416 = vunpack.c.l.b16 %v368
        %v417 = vunpack.c.h.b16 %v368
        %v418 = vunpack.c.l.b16 %v369
        %v419 = vunpack.c.h.b16 %v369
        %v420 = vunpack.c.l.b16 %v370
        %v421 = vunpack.c.h.b16 %v370
        %v422 = vunpack.c.l.b16 %v371
        %v423 = vunpack.c.h.b16 %v371
        %v424 = vunpack.c.l.b16 %v372
        %v425 = vunpack.c.h.b16 %v372
        %v426 = vunpack.c.l.b16 %v373
        %v427 = vunpack.c.h.b16 %v373
        %v428 = vpack.c.b16 %v398, %v396
        %v429 = vpack.c.b16 %v399, %v397
        %v430 = vpack.c.b16 %v402, %v400
        %v431 = vpack.c.b16 %v403, %v401
        %v432 = vpack.c.b16 %v406, %v404
        %v433 = vpack.c.b16 %v407, %v405
        %v434 = vpack.c.b16 %v410, %v408
        %v435 = vpack.c.b16 %v411, %v409
        %v436 = vpack.c.b16 %v414, %v412
        %v437 = vpack.c.b16 %v415, %v413
        %v438 = vpack.c.b16 %v418, %v416
        %v439 = vpack.c.b16 %v419, %v417
        %v440 = vpack.c.b16 %v422, %v420
        %v441 = vpack.c.b16 %v423, %v421
        %v442 = vpack.c.b16 %v426, %v424
        %v443 = vpack.c.b16 %v427, %v425
        %460 = vmatpush.bf16.msra.mxu0 %v442
        %461 = vmatpush.bf16.msra.mxu0 %v440
        %462 = vmatpush.bf16.msra.mxu0 %v438
        %463 = vmatpush.bf16.msra.mxu0 %v436
        %464 = vmatpush.bf16.msra.mxu0 %v434
        %465 = vmatpush.bf16.msra.mxu0 %v432
        %466 = vmatpush.bf16.msra.mxu0 %v430
        %467 = vmatpush.bf16.msra.mxu0 %v428
        %468 = vmatmul.bf16.gmra.mxu0 %v350
        %v469 = vpop.f32.mrf.mxu0
        %v470 = vadd.f32 %v376, %v469
        %v471 = vpop.f32.mrf.mxu0
        %v472 = vadd.f32 %v376, %v471
        %473 = vmatmul.bf16.gmra.mxu0 %v351
        %v474 = vpop.f32.mrf.mxu0
        %v475 = vadd.f32 %v376, %v474
        %v476 = vpop.f32.mrf.mxu0
        %v477 = vadd.f32 %v376, %v476
        %478 = vmatmul.bf16.gmra.mxu0 %v352
        %v479 = vpop.f32.mrf.mxu0
        %v480 = vadd.f32 %v376, %v479
        %v481 = vpop.f32.mrf.mxu0
        %v482 = vadd.f32 %v376, %v481
        %483 = vmatmul.bf16.gmra.mxu0 %v353
        %v484 = vpop.f32.mrf.mxu0
        %v485 = vadd.f32 %v376, %v484
        %v486 = vpop.f32.mrf.mxu0
        %v487 = vadd.f32 %v376, %v486
        %488 = vmatmul.bf16.gmra.mxu0 %v354
        %v489 = vpop.f32.mrf.mxu0
        %v490 = vadd.f32 %v376, %v489
        %v491 = vpop.f32.mrf.mxu0
        %v492 = vadd.f32 %v376, %v491
        %493 = vmatmul.bf16.gmra.mxu0 %v355
        %v494 = vpop.f32.mrf.mxu0
        %v495 = vadd.f32 %v376, %v494
        %v496 = vpop.f32.mrf.mxu0
        %v497 = vadd.f32 %v376, %v496
        %498 = vmatmul.bf16.gmra.mxu0 %v356
        %v499 = vpop.f32.mrf.mxu0
        %v500 = vadd.f32 %v376, %v499
        %v501 = vpop.f32.mrf.mxu0
        %v502 = vadd.f32 %v376, %v501
        %503 = vmatmul.bf16.gmra.mxu0 %v357
        %v504 = vpop.f32.mrf.mxu0
        %v505 = vadd.f32 %v376, %v504
        %v506 = vpop.f32.mrf.mxu0
        %v507 = vadd.f32 %v376, %v506
        %508 = vdwg.mxu0
        %509 = vmatpush.bf16.msra.mxu0 %v443
        %510 = vmatpush.bf16.msra.mxu0 %v441
        %511 = vmatpush.bf16.msra.mxu0 %v439
        %512 = vmatpush.bf16.msra.mxu0 %v437
        %513 = vmatpush.bf16.msra.mxu0 %v435
        %514 = vmatpush.bf16.msra.mxu0 %v433
        %515 = vmatpush.bf16.msra.mxu0 %v431
        %516 = vmatpush.bf16.msra.mxu0 %v429
        %517 = vmatmul.bf16.gmra.mxu0 %v350
        %v518 = vpop.f32.mrf.mxu0
        %v519 = vadd.f32 %v377, %v518
        %v520 = vpop.f32.mrf.mxu0
        %v521 = vadd.f32 %v377, %v520
        %522 = vmatmul.bf16.gmra.mxu0 %v351
        %v523 = vpop.f32.mrf.mxu0
        %v524 = vadd.f32 %v377, %v523
        %v525 = vpop.f32.mrf.mxu0
        %v526 = vadd.f32 %v377, %v525
        %527 = vmatmul.bf16.gmra.mxu0 %v352
        %v528 = vpop.f32.mrf.mxu0
        %v529 = vadd.f32 %v377, %v528
        %v530 = vpop.f32.mrf.mxu0
        %v531 = vadd.f32 %v377, %v530
        %532 = vmatmul.bf16.gmra.mxu0 %v353
        %v533 = vpop.f32.mrf.mxu0
        %v534 = vadd.f32 %v377, %v533
        %v535 = vpop.f32.mrf.mxu0
        %v536 = vadd.f32 %v377, %v535
        %537 = vmatmul.bf16.gmra.mxu0 %v354
        %v538 = vpop.f32.mrf.mxu0
        %v539 = vadd.f32 %v377, %v538
        %v540 = vpop.f32.mrf.mxu0
        %v541 = vadd.f32 %v377, %v540
        %542 = vmatmul.bf16.gmra.mxu0 %v355
        %v543 = vpop.f32.mrf.mxu0
        %v544 = vadd.f32 %v377, %v543
        %v545 = vpop.f32.mrf.mxu0
        %v546 = vadd.f32 %v377, %v545
        %547 = vmatmul.bf16.gmra.mxu0 %v356
        %v548 = vpop.f32.mrf.mxu0
        %v549 = vadd.f32 %v377, %v548
        %v550 = vpop.f32.mrf.mxu0
        %v551 = vadd.f32 %v377, %v550
        %552 = vmatmul.bf16.gmra.mxu0 %v357
        %v553 = vpop.f32.mrf.mxu0
        %v554 = vadd.f32 %v377, %v553
        %v555 = vpop.f32.mrf.mxu0
        %v556 = vadd.f32 %v377, %v555
        %557 = vdwg.mxu0
        %v558 = vld [vmem:[%s3] sm:$0x1]
        %v559 = vld [vmem:[%s4] sm:$0x1]
        %560 = vadd.xlane.f32.xlu0 %v470
        %v561 = vpop.xlane.xlu0 %560
        %562 = vadd.xlane.f32.xlu0 %v472
        %v563 = vpop.xlane.xlu0 %562
        %564 = vadd.xlane.f32.xlu0 %v475
        %v565 = vpop.xlane.xlu0 %564
        %566 = vadd.xlane.f32.xlu0 %v477
        %v567 = vpop.xlane.xlu0 %566
        %568 = vadd.xlane.f32.xlu0 %v480
        %v569 = vpop.xlane.xlu0 %568
        %570 = vadd.xlane.f32.xlu0 %v482
        %v571 = vpop.xlane.xlu0 %570
        %572 = vadd.xlane.f32.xlu0 %v485
        %v573 = vpop.xlane.xlu0 %572
        %574 = vadd.xlane.f32.xlu0 %v487
        %v575 = vpop.xlane.xlu0 %574
        %576 = vadd.xlane.f32.xlu0 %v490
        %v577 = vpop.xlane.xlu0 %576
        %578 = vadd.xlane.f32.xlu0 %v492
        %v579 = vpop.xlane.xlu0 %578
        %580 = vadd.xlane.f32.xlu0 %v495
        %v581 = vpop.xlane.xlu0 %580
        %582 = vadd.xlane.f32.xlu0 %v497
        %v583 = vpop.xlane.xlu0 %582
        %584 = vadd.xlane.f32.xlu0 %v500
        %v585 = vpop.xlane.xlu0 %584
        %586 = vadd.xlane.f32.xlu0 %v502
        %v587 = vpop.xlane.xlu0 %586
        %588 = vadd.xlane.f32.xlu0 %v505
        %v589 = vpop.xlane.xlu0 %588
        %590 = vadd.xlane.f32.xlu0 %v507
        %v591 = vpop.xlane.xlu0 %590
        %v592 = vrcp.pop 128.0
        %v593 = vmul.f32 128.0, %v592
        %v594 = vsub.f32 1.0, %v593
        %v595 = vmul.f32 %v592, %v594
        %v596 = vadd.f32 %v592, %v595
        %vm597 = vweird.f32 %v592
        %v598 = vsel %vm597, %v592, %v596
        %v599 = vmul.f32 %v561, %v598
        %v600 = vmul.f32 %v563, %v598
        %v601 = vmul.f32 %v565, %v598
        %v602 = vmul.f32 %v567, %v598
        %v603 = vmul.f32 %v569, %v598
        %v604 = vmul.f32 %v571, %v598
        %v605 = vmul.f32 %v573, %v598
        %v606 = vmul.f32 %v575, %v598
        %v607 = vmul.f32 %v577, %v598
        %v608 = vmul.f32 %v579, %v598
        %v609 = vmul.f32 %v581, %v598
        %v610 = vmul.f32 %v583, %v598
        %v611 = vmul.f32 %v585, %v598
        %v612 = vmul.f32 %v587, %v598
        %v613 = vmul.f32 %v589, %v598
        %v614 = vmul.f32 %v591, %v598
        %v615 = vmul.f32 %v470, %v470
        %v616 = vmul.f32 %v472, %v472
        %v617 = vmul.f32 %v475, %v475
        %v618 = vmul.f32 %v477, %v477
        %v619 = vmul.f32 %v480, %v480
        %v620 = vmul.f32 %v482, %v482
        %v621 = vmul.f32 %v485, %v485
        %v622 = vmul.f32 %v487, %v487
        %v623 = vmul.f32 %v490, %v490
        %v624 = vmul.f32 %v492, %v492
        %v625 = vmul.f32 %v495, %v495
        %v626 = vmul.f32 %v497, %v497
        %v627 = vmul.f32 %v500, %v500
        %v628 = vmul.f32 %v502, %v502
        %v629 = vmul.f32 %v505, %v505
        %v630 = vmul.f32 %v507, %v507
        %631 = vadd.xlane.f32.xlu0 %v615
        %v632 = vpop.xlane.xlu0 %631
        %633 = vadd.xlane.f32.xlu0 %v616
        %v634 = vpop.xlane.xlu0 %633
        %635 = vadd.xlane.f32.xlu0 %v617
        %v636 = vpop.xlane.xlu0 %635
        %637 = vadd.xlane.f32.xlu0 %v618
        %v638 = vpop.xlane.xlu0 %637
        %639 = vadd.xlane.f32.xlu0 %v619
        %v640 = vpop.xlane.xlu0 %639
        %641 = vadd.xlane.f32.xlu0 %v620
        %v642 = vpop.xlane.xlu0 %641
        %643 = vadd.xlane.f32.xlu0 %v621
        %v644 = vpop.xlane.xlu0 %643
        %645 = vadd.xlane.f32.xlu0 %v622
        %v646 = vpop.xlane.xlu0 %645
        %647 = vadd.xlane.f32.xlu0 %v623
        %v648 = vpop.xlane.xlu0 %647
        %649 = vadd.xlane.f32.xlu0 %v624
        %v650 = vpop.xlane.xlu0 %649
        %651 = vadd.xlane.f32.xlu0 %v625
        %v652 = vpop.xlane.xlu0 %651
        %653 = vadd.xlane.f32.xlu0 %v626
        %v654 = vpop.xlane.xlu0 %653
        %655 = vadd.xlane.f32.xlu0 %v627
        %v656 = vpop.xlane.xlu0 %655
        %657 = vadd.xlane.f32.xlu0 %v628
        %v658 = vpop.xlane.xlu0 %657
        %659 = vadd.xlane.f32.xlu0 %v629
        %v660 = vpop.xlane.xlu0 %659
        %661 = vadd.xlane.f32.xlu0 %v630
        %v662 = vpop.xlane.xlu0 %661
        %v663 = vmul.f32 %v632, %v598
        %v664 = vmul.f32 %v634, %v598
        %v665 = vmul.f32 %v636, %v598
        %v666 = vmul.f32 %v638, %v598
        %v667 = vmul.f32 %v640, %v598
        %v668 = vmul.f32 %v642, %v598
        %v669 = vmul.f32 %v644, %v598
        %v670 = vmul.f32 %v646, %v598
        %v671 = vmul.f32 %v648, %v598
        %v672 = vmul.f32 %v650, %v598
        %v673 = vmul.f32 %v652, %v598
        %v674 = vmul.f32 %v654, %v598
        %v675 = vmul.f32 %v656, %v598
        %v676 = vmul.f32 %v658, %v598
        %v677 = vmul.f32 %v660, %v598
        %v678 = vmul.f32 %v662, %v598
        %v679 = vmul.f32 %v599, %v599
        %v680 = vmul.f32 %v600, %v600
        %v681 = vmul.f32 %v601, %v601
        %v682 = vmul.f32 %v602, %v602
        %v683 = vmul.f32 %v603, %v603
        %v684 = vmul.f32 %v604, %v604
        %v685 = vmul.f32 %v605, %v605
        %v686 = vmul.f32 %v606, %v606
        %v687 = vmul.f32 %v607, %v607
        %v688 = vmul.f32 %v608, %v608
        %v689 = vmul.f32 %v609, %v609
        %v690 = vmul.f32 %v610, %v610
        %v691 = vmul.f32 %v611, %v611
        %v692 = vmul.f32 %v612, %v612
        %v693 = vmul.f32 %v613, %v613
        %v694 = vmul.f32 %v614, %v614
        %v695 = vsub.f32 %v663, %v679
        %v696 = vsub.f32 %v664, %v680
        %v697 = vsub.f32 %v665, %v681
        %v698 = vsub.f32 %v666, %v682
        %v699 = vsub.f32 %v667, %v683
        %v700 = vsub.f32 %v668, %v684
        %v701 = vsub.f32 %v669, %v685
        %v702 = vsub.f32 %v670, %v686
        %v703 = vsub.f32 %v671, %v687
        %v704 = vsub.f32 %v672, %v688
        %v705 = vsub.f32 %v673, %v689
        %v706 = vsub.f32 %v674, %v690
        %v707 = vsub.f32 %v675, %v691
        %v708 = vsub.f32 %v676, %v692
        %v709 = vsub.f32 %v677, %v693
        %v710 = vsub.f32 %v678, %v694
        %v711 = vmax.f32 %v695, 0.0
        %v712 = vmax.f32 %v696, 0.0
        %v713 = vmax.f32 %v697, 0.0
        %v714 = vmax.f32 %v698, 0.0
        %v715 = vmax.f32 %v699, 0.0
        %v716 = vmax.f32 %v700, 0.0
        %v717 = vmax.f32 %v701, 0.0
        %v718 = vmax.f32 %v702, 0.0
        %v719 = vmax.f32 %v703, 0.0
        %v720 = vmax.f32 %v704, 0.0
        %v721 = vmax.f32 %v705, 0.0
        %v722 = vmax.f32 %v706, 0.0
        %v723 = vmax.f32 %v707, 0.0
        %v724 = vmax.f32 %v708, 0.0
        %v725 = vmax.f32 %v709, 0.0
        %v726 = vmax.f32 %v710, 0.0
        %v727 = vsub.f32 %v470, %v599
        %v728 = vsub.f32 %v472, %v600
        %v729 = vsub.f32 %v475, %v601
        %v730 = vsub.f32 %v477, %v602
        %v731 = vsub.f32 %v480, %v603
        %v732 = vsub.f32 %v482, %v604
        %v733 = vsub.f32 %v485, %v605
        %v734 = vsub.f32 %v487, %v606
        %v735 = vsub.f32 %v490, %v607
        %v736 = vsub.f32 %v492, %v608
        %v737 = vsub.f32 %v495, %v609
        %v738 = vsub.f32 %v497, %v610
        %v739 = vsub.f32 %v500, %v611
        %v740 = vsub.f32 %v502, %v612
        %v741 = vsub.f32 %v505, %v613
        %v742 = vsub.f32 %v507, %v614
        %v743 = vadd.f32 %v711, 1e-05
        %v744 = vadd.f32 %v712, 1e-05
        %v745 = vadd.f32 %v713, 1e-05
        %v746 = vadd.f32 %v714, 1e-05
        %v747 = vadd.f32 %v715, 1e-05
        %v748 = vadd.f32 %v716, 1e-05
        %v749 = vadd.f32 %v717, 1e-05
        %v750 = vadd.f32 %v718, 1e-05
        %v751 = vadd.f32 %v719, 1e-05
        %v752 = vadd.f32 %v720, 1e-05
        %v753 = vadd.f32 %v721, 1e-05
        %v754 = vadd.f32 %v722, 1e-05
        %v755 = vadd.f32 %v723, 1e-05
        %v756 = vadd.f32 %v724, 1e-05
        %v757 = vadd.f32 %v725, 1e-05
        %v758 = vadd.f32 %v726, 1e-05
        %v759 = vrsqrt.pop %v743
        %v760 = vmul.f32 %v759, %v743
        %v761 = vmul.f32 %v760, %v759
        %v762 = vmul.f32 0.5, %v761
        %v763 = vsub.f32 1.5, %v762
        %v764 = vmul.f32 %v759, %v763
        %vm765 = vweird.f32 %v743
        %vm766 = vweird.f32 %v759
        %vm767 = vmor %vm765, %vm766
        %v768 = vsel %vm767, %v759, %v764
        %v769 = vrsqrt.pop %v744
        %v770 = vmul.f32 %v769, %v744
        %v771 = vmul.f32 %v770, %v769
        %v772 = vmul.f32 0.5, %v771
        %v773 = vsub.f32 1.5, %v772
        %v774 = vmul.f32 %v769, %v773
        %vm775 = vweird.f32 %v744
        %vm776 = vweird.f32 %v769
        %vm777 = vmor %vm775, %vm776
        %v778 = vsel %vm777, %v769, %v774
        %v779 = vrsqrt.pop %v745
        %v780 = vmul.f32 %v779, %v745
        %v781 = vmul.f32 %v780, %v779
        %v782 = vmul.f32 0.5, %v781
        %v783 = vsub.f32 1.5, %v782
        %v784 = vmul.f32 %v779, %v783
        %vm785 = vweird.f32 %v745
        %vm786 = vweird.f32 %v779
        %vm787 = vmor %vm785, %vm786
        %v788 = vsel %vm787, %v779, %v784
        %v789 = vrsqrt.pop %v746
        %v790 = vmul.f32 %v789, %v746
        %v791 = vmul.f32 %v790, %v789
        %v792 = vmul.f32 0.5, %v791
        %v793 = vsub.f32 1.5, %v792
        %v794 = vmul.f32 %v789, %v793
        %vm795 = vweird.f32 %v746
        %vm796 = vweird.f32 %v789
        %vm797 = vmor %vm795, %vm796
        %v798 = vsel %vm797, %v789, %v794
        %v799 = vrsqrt.pop %v747
        %v800 = vmul.f32 %v799, %v747
        %v801 = vmul.f32 %v800, %v799
        %v802 = vmul.f32 0.5, %v801
        %v803 = vsub.f32 1.5, %v802
        %v804 = vmul.f32 %v799, %v803
        %vm805 = vweird.f32 %v747
        %vm806 = vweird.f32 %v799
        %vm807 = vmor %vm805, %vm806
        %v808 = vsel %vm807, %v799, %v804
        %v809 = vrsqrt.pop %v748
        %v810 = vmul.f32 %v809, %v748
        %v811 = vmul.f32 %v810, %v809
        %v812 = vmul.f32 0.5, %v811
        %v813 = vsub.f32 1.5, %v812
        %v814 = vmul.f32 %v809, %v813
        %vm815 = vweird.f32 %v748
        %vm816 = vweird.f32 %v809
        %vm817 = vmor %vm815, %vm816
        %v818 = vsel %vm817, %v809, %v814
        %v819 = vrsqrt.pop %v749
        %v820 = vmul.f32 %v819, %v749
        %v821 = vmul.f32 %v820, %v819
        %v822 = vmul.f32 0.5, %v821
        %v823 = vsub.f32 1.5, %v822
        %v824 = vmul.f32 %v819, %v823
        %vm825 = vweird.f32 %v749
        %vm826 = vweird.f32 %v819
        %vm827 = vmor %vm825, %vm826
        %v828 = vsel %vm827, %v819, %v824
        %v829 = vrsqrt.pop %v750
        %v830 = vmul.f32 %v829, %v750
        %v831 = vmul.f32 %v830, %v829
        %v832 = vmul.f32 0.5, %v831
        %v833 = vsub.f32 1.5, %v832
        %v834 = vmul.f32 %v829, %v833
        %vm835 = vweird.f32 %v750
        %vm836 = vweird.f32 %v829
        %vm837 = vmor %vm835, %vm836
        %v838 = vsel %vm837, %v829, %v834
        %v839 = vrsqrt.pop %v751
        %v840 = vmul.f32 %v839, %v751
        %v841 = vmul.f32 %v840, %v839
        %v842 = vmul.f32 0.5, %v841
        %v843 = vsub.f32 1.5, %v842
        %v844 = vmul.f32 %v839, %v843
        %vm845 = vweird.f32 %v751
        %vm846 = vweird.f32 %v839
        %vm847 = vmor %vm845, %vm846
        %v848 = vsel %vm847, %v839, %v844
        %v849 = vrsqrt.pop %v752
        %v850 = vmul.f32 %v849, %v752
        %v851 = vmul.f32 %v850, %v849
        %v852 = vmul.f32 0.5, %v851
        %v853 = vsub.f32 1.5, %v852
        %v854 = vmul.f32 %v849, %v853
        %vm855 = vweird.f32 %v752
        %vm856 = vweird.f32 %v849
        %vm857 = vmor %vm855, %vm856
        %v858 = vsel %vm857, %v849, %v854
        %v859 = vrsqrt.pop %v753
        %v860 = vmul.f32 %v859, %v753
        %v861 = vmul.f32 %v860, %v859
        %v862 = vmul.f32 0.5, %v861
        %v863 = vsub.f32 1.5, %v862
        %v864 = vmul.f32 %v859, %v863
        %vm865 = vweird.f32 %v753
        %vm866 = vweird.f32 %v859
        %vm867 = vmor %vm865, %vm866
        %v868 = vsel %vm867, %v859, %v864
        %v869 = vrsqrt.pop %v754
        %v870 = vmul.f32 %v869, %v754
        %v871 = vmul.f32 %v870, %v869
        %v872 = vmul.f32 0.5, %v871
        %v873 = vsub.f32 1.5, %v872
        %v874 = vmul.f32 %v869, %v873
        %vm875 = vweird.f32 %v754
        %vm876 = vweird.f32 %v869
        %vm877 = vmor %vm875, %vm876
        %v878 = vsel %vm877, %v869, %v874
        %v879 = vrsqrt.pop %v755
        %v880 = vmul.f32 %v879, %v755
        %v881 = vmul.f32 %v880, %v879
        %v882 = vmul.f32 0.5, %v881
        %v883 = vsub.f32 1.5, %v882
        %v884 = vmul.f32 %v879, %v883
        %vm885 = vweird.f32 %v755
        %vm886 = vweird.f32 %v879
        %vm887 = vmor %vm885, %vm886
        %v888 = vsel %vm887, %v879, %v884
        %v889 = vrsqrt.pop %v756
        %v890 = vmul.f32 %v889, %v756
        %v891 = vmul.f32 %v890, %v889
        %v892 = vmul.f32 0.5, %v891
        %v893 = vsub.f32 1.5, %v892
        %v894 = vmul.f32 %v889, %v893
        %vm895 = vweird.f32 %v756
        %vm896 = vweird.f32 %v889
        %vm897 = vmor %vm895, %vm896
        %v898 = vsel %vm897, %v889, %v894
        %v899 = vrsqrt.pop %v757
        %v900 = vmul.f32 %v899, %v757
        %v901 = vmul.f32 %v900, %v899
        %v902 = vmul.f32 0.5, %v901
        %v903 = vsub.f32 1.5, %v902
        %v904 = vmul.f32 %v899, %v903
        %vm905 = vweird.f32 %v757
        %vm906 = vweird.f32 %v899
        %vm907 = vmor %vm905, %vm906
        %v908 = vsel %vm907, %v899, %v904
        %v909 = vrsqrt.pop %v758
        %v910 = vmul.f32 %v909, %v758
        %v911 = vmul.f32 %v910, %v909
        %v912 = vmul.f32 0.5, %v911
        %v913 = vsub.f32 1.5, %v912
        %v914 = vmul.f32 %v909, %v913
        %vm915 = vweird.f32 %v758
        %vm916 = vweird.f32 %v909
        %vm917 = vmor %vm915, %vm916
        %v918 = vsel %vm917, %v909, %v914
        %v919 = vmul.f32 %v727, %v768
        %v920 = vmul.f32 %v728, %v778
        %v921 = vmul.f32 %v729, %v788
        %v922 = vmul.f32 %v730, %v798
        %v923 = vmul.f32 %v731, %v808
        %v924 = vmul.f32 %v732, %v818
        %v925 = vmul.f32 %v733, %v828
        %v926 = vmul.f32 %v734, %v838
        %v927 = vmul.f32 %v735, %v848
        %v928 = vmul.f32 %v736, %v858
        %v929 = vmul.f32 %v737, %v868
        %v930 = vmul.f32 %v738, %v878
        %v931 = vmul.f32 %v739, %v888
        %v932 = vmul.f32 %v740, %v898
        %v933 = vmul.f32 %v741, %v908
        %v934 = vmul.f32 %v742, %v918
        %v936 = vperm.slane %v558, 0
        %v938 = vmul.f32 %v919, %v936
        %v939 = vmul.f32 %v920, %v936
        %v940 = vmul.f32 %v921, %v936
        %v941 = vmul.f32 %v922, %v936
        %v942 = vmul.f32 %v923, %v936
        %v943 = vmul.f32 %v924, %v936
        %v944 = vmul.f32 %v925, %v936
        %v945 = vmul.f32 %v926, %v936
        %v946 = vmul.f32 %v927, %v936
        %v947 = vmul.f32 %v928, %v936
        %v948 = vmul.f32 %v929, %v936
        %v949 = vmul.f32 %v930, %v936
        %v950 = vmul.f32 %v931, %v936
        %v951 = vmul.f32 %v932, %v936
        %v952 = vmul.f32 %v933, %v936
        %v953 = vmul.f32 %v934, %v936
        %v955 = vperm.slane %v559, 0
        %v957 = vadd.f32 %v938, %v955
        %v958 = vadd.f32 %v939, %v955
        %v959 = vadd.f32 %v940, %v955
        %v960 = vadd.f32 %v941, %v955
        %v961 = vadd.f32 %v942, %v955
        %v962 = vadd.f32 %v943, %v955
        %v963 = vadd.f32 %v944, %v955
        %v964 = vadd.f32 %v945, %v955
        %v965 = vadd.f32 %v946, %v955
        %v966 = vadd.f32 %v947, %v955
        %v967 = vadd.f32 %v948, %v955
        %v968 = vadd.f32 %v949, %v955
        %v969 = vadd.f32 %v950, %v955
        %v970 = vadd.f32 %v951, %v955
        %v971 = vadd.f32 %v952, %v955
        %v972 = vadd.f32 %v953, %v955
        %v973 = vmax.f32 %v957, 0.0
        %v974 = vmax.f32 %v958, 0.0
        %v975 = vmax.f32 %v959, 0.0
        %v976 = vmax.f32 %v960, 0.0
        %v977 = vmax.f32 %v961, 0.0
        %v978 = vmax.f32 %v962, 0.0
        %v979 = vmax.f32 %v963, 0.0
        %v980 = vmax.f32 %v964, 0.0
        %v981 = vmax.f32 %v965, 0.0
        %v982 = vmax.f32 %v966, 0.0
        %v983 = vmax.f32 %v967, 0.0
        %v984 = vmax.f32 %v968, 0.0
        %v985 = vmax.f32 %v969, 0.0
        %v986 = vmax.f32 %v970, 0.0
        %v987 = vmax.f32 %v971, 0.0
        %v988 = vmax.f32 %v972, 0.0
        %v989 = vld [vmem:[%s5] sm:$0xf]
        %v990 = vld [vmem:[%s5 + $0x4] sm:$0xf]
        %v991 = vld [vmem:[%s5 + $0x8] sm:$0xf]
        %v992 = vld [vmem:[%s5 + $0xc] sm:$0xf]
        %v993 = vld [vmem:[%s5 + $0x10] sm:$0xf]
        %v994 = vld [vmem:[%s5 + $0x14] sm:$0xf]
        %v995 = vld [vmem:[%s5 + $0x18] sm:$0xf]
        %v996 = vld [vmem:[%s5 + $0x1c] sm:$0xf]
        %v997 = vld [vmem:[%s5 + $0x20] sm:$0xf]
        %v998 = vld [vmem:[%s5 + $0x24] sm:$0xf]
        %v999 = vld [vmem:[%s5 + $0x28] sm:$0xf]
        %v1000 = vld [vmem:[%s5 + $0x2c] sm:$0xf]
        %v1001 = vld [vmem:[%s5 + $0x30] sm:$0xf]
        %v1002 = vld [vmem:[%s5 + $0x34] sm:$0xf]
        %v1003 = vld [vmem:[%s5 + $0x38] sm:$0xf]
        %v1004 = vld [vmem:[%s5 + $0x3c] sm:$0xf]
        %v1005 = vld [vmem:[%s6] sm:$0x1]
        %v1006 = vld [vmem:[%s7] sm:$0x1]
        %v1007 = vld [vmem:[%s8] sm:$0x1]
        %v1008 = vpack.c.bf16 %v974, %v973
        %v1009 = vpack.c.bf16 %v976, %v975
        %v1010 = vpack.c.bf16 %v978, %v977
        %v1011 = vpack.c.bf16 %v980, %v979
        %v1012 = vpack.c.bf16 %v982, %v981
        %v1013 = vpack.c.bf16 %v984, %v983
        %v1014 = vpack.c.bf16 %v986, %v985
        %v1015 = vpack.c.bf16 %v988, %v987
        %v1017 = vperm.slane %v1005, 0
        %v1035 = vunpack.c.l.b16 %v989
        %v1036 = vunpack.c.l.b16 %v990
        %v1037 = vunpack.c.l.b16 %v991
        %v1038 = vunpack.c.l.b16 %v992
        %v1039 = vunpack.c.l.b16 %v993
        %v1040 = vunpack.c.l.b16 %v994
        %v1041 = vunpack.c.l.b16 %v995
        %v1042 = vunpack.c.l.b16 %v996
        %v1043 = vunpack.c.l.b16 %v997
        %v1044 = vunpack.c.l.b16 %v998
        %v1045 = vunpack.c.l.b16 %v999
        %v1046 = vunpack.c.l.b16 %v1000
        %v1047 = vunpack.c.l.b16 %v1001
        %v1048 = vunpack.c.l.b16 %v1002
        %v1049 = vunpack.c.l.b16 %v1003
        %v1050 = vunpack.c.l.b16 %v1004
        %v1051 = vpack.c.b16 %v1036, %v1035
        %v1052 = vpack.c.b16 %v1038, %v1037
        %v1053 = vpack.c.b16 %v1040, %v1039
        %v1054 = vpack.c.b16 %v1042, %v1041
        %v1055 = vpack.c.b16 %v1044, %v1043
        %v1056 = vpack.c.b16 %v1046, %v1045
        %v1057 = vpack.c.b16 %v1048, %v1047
        %v1058 = vpack.c.b16 %v1050, %v1049
        %1067 = vmatpush.bf16.msra.mxu0 %v1058
        %1068 = vmatpush.bf16.msra.mxu0 %v1057
        %1069 = vmatpush.bf16.msra.mxu0 %v1056
        %1070 = vmatpush.bf16.msra.mxu0 %v1055
        %1071 = vmatpush.bf16.msra.mxu0 %v1054
        %1072 = vmatpush.bf16.msra.mxu0 %v1053
        %1073 = vmatpush.bf16.msra.mxu0 %v1052
        %1074 = vmatpush.bf16.msra.mxu0 %v1051
        %1075 = vmatmul.bf16.gmra.mxu0 %v1008
        %v1076 = vpop.f32.mrf.mxu0
        %v1077 = vadd.f32 %v1017, %v1076
        %v1078 = vpop.f32.mrf.mxu0
        %v1079 = vadd.f32 %v1017, %v1078
        %1080 = vmatmul.bf16.gmra.mxu0 %v1009
        %v1081 = vpop.f32.mrf.mxu0
        %v1082 = vadd.f32 %v1017, %v1081
        %v1083 = vpop.f32.mrf.mxu0
        %v1084 = vadd.f32 %v1017, %v1083
        %1085 = vmatmul.bf16.gmra.mxu0 %v1010
        %v1086 = vpop.f32.mrf.mxu0
        %v1087 = vadd.f32 %v1017, %v1086
        %v1088 = vpop.f32.mrf.mxu0
        %v1089 = vadd.f32 %v1017, %v1088
        %1090 = vmatmul.bf16.gmra.mxu0 %v1011
        %v1091 = vpop.f32.mrf.mxu0
        %v1092 = vadd.f32 %v1017, %v1091
        %v1093 = vpop.f32.mrf.mxu0
        %v1094 = vadd.f32 %v1017, %v1093
        %1095 = vmatmul.bf16.gmra.mxu0 %v1012
        %v1096 = vpop.f32.mrf.mxu0
        %v1097 = vadd.f32 %v1017, %v1096
        %v1098 = vpop.f32.mrf.mxu0
        %v1099 = vadd.f32 %v1017, %v1098
        %1100 = vmatmul.bf16.gmra.mxu0 %v1013
        %v1101 = vpop.f32.mrf.mxu0
        %v1102 = vadd.f32 %v1017, %v1101
        %v1103 = vpop.f32.mrf.mxu0
        %v1104 = vadd.f32 %v1017, %v1103
        %1105 = vmatmul.bf16.gmra.mxu0 %v1014
        %v1106 = vpop.f32.mrf.mxu0
        %v1107 = vadd.f32 %v1017, %v1106
        %v1108 = vpop.f32.mrf.mxu0
        %v1109 = vadd.f32 %v1017, %v1108
        %1110 = vmatmul.bf16.gmra.mxu0 %v1015
        %v1111 = vpop.f32.mrf.mxu0
        %v1112 = vadd.f32 %v1017, %v1111
        %v1113 = vpop.f32.mrf.mxu0
        %v1114 = vadd.f32 %v1017, %v1113
        %1115 = vdwg.mxu0
        %1116 = vadd.xlane.f32.xlu0 %v1077
        %v1117 = vpop.xlane.xlu0 %1116
        %1118 = vadd.xlane.f32.xlu0 %v1079
        %v1119 = vpop.xlane.xlu0 %1118
        %1120 = vadd.xlane.f32.xlu0 %v1082
        %v1121 = vpop.xlane.xlu0 %1120
        %1122 = vadd.xlane.f32.xlu0 %v1084
        %v1123 = vpop.xlane.xlu0 %1122
        %1124 = vadd.xlane.f32.xlu0 %v1087
        %v1125 = vpop.xlane.xlu0 %1124
        %1126 = vadd.xlane.f32.xlu0 %v1089
        %v1127 = vpop.xlane.xlu0 %1126
        %1128 = vadd.xlane.f32.xlu0 %v1092
        %v1129 = vpop.xlane.xlu0 %1128
        %1130 = vadd.xlane.f32.xlu0 %v1094
        %v1131 = vpop.xlane.xlu0 %1130
        %1132 = vadd.xlane.f32.xlu0 %v1097
        %v1133 = vpop.xlane.xlu0 %1132
        %1134 = vadd.xlane.f32.xlu0 %v1099
        %v1135 = vpop.xlane.xlu0 %1134
        %1136 = vadd.xlane.f32.xlu0 %v1102
        %v1137 = vpop.xlane.xlu0 %1136
        %1138 = vadd.xlane.f32.xlu0 %v1104
        %v1139 = vpop.xlane.xlu0 %1138
        %1140 = vadd.xlane.f32.xlu0 %v1107
        %v1141 = vpop.xlane.xlu0 %1140
        %1142 = vadd.xlane.f32.xlu0 %v1109
        %v1143 = vpop.xlane.xlu0 %1142
        %1144 = vadd.xlane.f32.xlu0 %v1112
        %v1145 = vpop.xlane.xlu0 %1144
        %1146 = vadd.xlane.f32.xlu0 %v1114
        %v1147 = vpop.xlane.xlu0 %1146
        %v1148 = vmul.f32 %v1117, %v598
        %v1149 = vmul.f32 %v1119, %v598
        %v1150 = vmul.f32 %v1121, %v598
        %v1151 = vmul.f32 %v1123, %v598
        %v1152 = vmul.f32 %v1125, %v598
        %v1153 = vmul.f32 %v1127, %v598
        %v1154 = vmul.f32 %v1129, %v598
        %v1155 = vmul.f32 %v1131, %v598
        %v1156 = vmul.f32 %v1133, %v598
        %v1157 = vmul.f32 %v1135, %v598
        %v1158 = vmul.f32 %v1137, %v598
        %v1159 = vmul.f32 %v1139, %v598
        %v1160 = vmul.f32 %v1141, %v598
        %v1161 = vmul.f32 %v1143, %v598
        %v1162 = vmul.f32 %v1145, %v598
        %v1163 = vmul.f32 %v1147, %v598
        %v1164 = vmul.f32 %v1077, %v1077
        %v1165 = vmul.f32 %v1079, %v1079
        %v1166 = vmul.f32 %v1082, %v1082
        %v1167 = vmul.f32 %v1084, %v1084
        %v1168 = vmul.f32 %v1087, %v1087
        %v1169 = vmul.f32 %v1089, %v1089
        %v1170 = vmul.f32 %v1092, %v1092
        %v1171 = vmul.f32 %v1094, %v1094
        %v1172 = vmul.f32 %v1097, %v1097
        %v1173 = vmul.f32 %v1099, %v1099
        %v1174 = vmul.f32 %v1102, %v1102
        %v1175 = vmul.f32 %v1104, %v1104
        %v1176 = vmul.f32 %v1107, %v1107
        %v1177 = vmul.f32 %v1109, %v1109
        %v1178 = vmul.f32 %v1112, %v1112
        %v1179 = vmul.f32 %v1114, %v1114
        %1180 = vadd.xlane.f32.xlu0 %v1164
        %v1181 = vpop.xlane.xlu0 %1180
        %1182 = vadd.xlane.f32.xlu0 %v1165
        %v1183 = vpop.xlane.xlu0 %1182
        %1184 = vadd.xlane.f32.xlu0 %v1166
        %v1185 = vpop.xlane.xlu0 %1184
        %1186 = vadd.xlane.f32.xlu0 %v1167
        %v1187 = vpop.xlane.xlu0 %1186
        %1188 = vadd.xlane.f32.xlu0 %v1168
        %v1189 = vpop.xlane.xlu0 %1188
        %1190 = vadd.xlane.f32.xlu0 %v1169
        %v1191 = vpop.xlane.xlu0 %1190
        %1192 = vadd.xlane.f32.xlu0 %v1170
        %v1193 = vpop.xlane.xlu0 %1192
        %1194 = vadd.xlane.f32.xlu0 %v1171
        %v1195 = vpop.xlane.xlu0 %1194
        %1196 = vadd.xlane.f32.xlu0 %v1172
        %v1197 = vpop.xlane.xlu0 %1196
        %1198 = vadd.xlane.f32.xlu0 %v1173
        %v1199 = vpop.xlane.xlu0 %1198
        %1200 = vadd.xlane.f32.xlu0 %v1174
        %v1201 = vpop.xlane.xlu0 %1200
        %1202 = vadd.xlane.f32.xlu0 %v1175
        %v1203 = vpop.xlane.xlu0 %1202
        %1204 = vadd.xlane.f32.xlu0 %v1176
        %v1205 = vpop.xlane.xlu0 %1204
        %1206 = vadd.xlane.f32.xlu0 %v1177
        %v1207 = vpop.xlane.xlu0 %1206
        %1208 = vadd.xlane.f32.xlu0 %v1178
        %v1209 = vpop.xlane.xlu0 %1208
        %1210 = vadd.xlane.f32.xlu0 %v1179
        %v1211 = vpop.xlane.xlu0 %1210
        %v1212 = vmul.f32 %v1181, %v598
        %v1213 = vmul.f32 %v1183, %v598
        %v1214 = vmul.f32 %v1185, %v598
        %v1215 = vmul.f32 %v1187, %v598
        %v1216 = vmul.f32 %v1189, %v598
        %v1217 = vmul.f32 %v1191, %v598
        %v1218 = vmul.f32 %v1193, %v598
        %v1219 = vmul.f32 %v1195, %v598
        %v1220 = vmul.f32 %v1197, %v598
        %v1221 = vmul.f32 %v1199, %v598
        %v1222 = vmul.f32 %v1201, %v598
        %v1223 = vmul.f32 %v1203, %v598
        %v1224 = vmul.f32 %v1205, %v598
        %v1225 = vmul.f32 %v1207, %v598
        %v1226 = vmul.f32 %v1209, %v598
        %v1227 = vmul.f32 %v1211, %v598
        %v1228 = vmul.f32 %v1148, %v1148
        %v1229 = vmul.f32 %v1149, %v1149
        %v1230 = vmul.f32 %v1150, %v1150
        %v1231 = vmul.f32 %v1151, %v1151
        %v1232 = vmul.f32 %v1152, %v1152
        %v1233 = vmul.f32 %v1153, %v1153
        %v1234 = vmul.f32 %v1154, %v1154
        %v1235 = vmul.f32 %v1155, %v1155
        %v1236 = vmul.f32 %v1156, %v1156
        %v1237 = vmul.f32 %v1157, %v1157
        %v1238 = vmul.f32 %v1158, %v1158
        %v1239 = vmul.f32 %v1159, %v1159
        %v1240 = vmul.f32 %v1160, %v1160
        %v1241 = vmul.f32 %v1161, %v1161
        %v1242 = vmul.f32 %v1162, %v1162
        %v1243 = vmul.f32 %v1163, %v1163
        %v1244 = vsub.f32 %v1212, %v1228
        %v1245 = vsub.f32 %v1213, %v1229
        %v1246 = vsub.f32 %v1214, %v1230
        %v1247 = vsub.f32 %v1215, %v1231
        %v1248 = vsub.f32 %v1216, %v1232
        %v1249 = vsub.f32 %v1217, %v1233
        %v1250 = vsub.f32 %v1218, %v1234
        %v1251 = vsub.f32 %v1219, %v1235
        %v1252 = vsub.f32 %v1220, %v1236
        %v1253 = vsub.f32 %v1221, %v1237
        %v1254 = vsub.f32 %v1222, %v1238
        %v1255 = vsub.f32 %v1223, %v1239
        %v1256 = vsub.f32 %v1224, %v1240
        %v1257 = vsub.f32 %v1225, %v1241
        %v1258 = vsub.f32 %v1226, %v1242
        %v1259 = vsub.f32 %v1227, %v1243
        %v1260 = vmax.f32 %v1244, 0.0
        %v1261 = vmax.f32 %v1245, 0.0
        %v1262 = vmax.f32 %v1246, 0.0
        %v1263 = vmax.f32 %v1247, 0.0
        %v1264 = vmax.f32 %v1248, 0.0
        %v1265 = vmax.f32 %v1249, 0.0
        %v1266 = vmax.f32 %v1250, 0.0
        %v1267 = vmax.f32 %v1251, 0.0
        %v1268 = vmax.f32 %v1252, 0.0
        %v1269 = vmax.f32 %v1253, 0.0
        %v1270 = vmax.f32 %v1254, 0.0
        %v1271 = vmax.f32 %v1255, 0.0
        %v1272 = vmax.f32 %v1256, 0.0
        %v1273 = vmax.f32 %v1257, 0.0
        %v1274 = vmax.f32 %v1258, 0.0
        %v1275 = vmax.f32 %v1259, 0.0
        %v1276 = vsub.f32 %v1077, %v1148
        %v1277 = vsub.f32 %v1079, %v1149
        %v1278 = vsub.f32 %v1082, %v1150
        %v1279 = vsub.f32 %v1084, %v1151
        %v1280 = vsub.f32 %v1087, %v1152
        %v1281 = vsub.f32 %v1089, %v1153
        %v1282 = vsub.f32 %v1092, %v1154
        %v1283 = vsub.f32 %v1094, %v1155
        %v1284 = vsub.f32 %v1097, %v1156
        %v1285 = vsub.f32 %v1099, %v1157
        %v1286 = vsub.f32 %v1102, %v1158
        %v1287 = vsub.f32 %v1104, %v1159
        %v1288 = vsub.f32 %v1107, %v1160
        %v1289 = vsub.f32 %v1109, %v1161
        %v1290 = vsub.f32 %v1112, %v1162
        %v1291 = vsub.f32 %v1114, %v1163
        %v1292 = vadd.f32 %v1260, 1e-05
        %v1293 = vadd.f32 %v1261, 1e-05
        %v1294 = vadd.f32 %v1262, 1e-05
        %v1295 = vadd.f32 %v1263, 1e-05
        %v1296 = vadd.f32 %v1264, 1e-05
        %v1297 = vadd.f32 %v1265, 1e-05
        %v1298 = vadd.f32 %v1266, 1e-05
        %v1299 = vadd.f32 %v1267, 1e-05
        %v1300 = vadd.f32 %v1268, 1e-05
        %v1301 = vadd.f32 %v1269, 1e-05
        %v1302 = vadd.f32 %v1270, 1e-05
        %v1303 = vadd.f32 %v1271, 1e-05
        %v1304 = vadd.f32 %v1272, 1e-05
        %v1305 = vadd.f32 %v1273, 1e-05
        %v1306 = vadd.f32 %v1274, 1e-05
        %v1307 = vadd.f32 %v1275, 1e-05
        %v1308 = vrsqrt.pop %v1292
        %v1309 = vmul.f32 %v1308, %v1292
        %v1310 = vmul.f32 %v1309, %v1308
        %v1311 = vmul.f32 0.5, %v1310
        %v1312 = vsub.f32 1.5, %v1311
        %v1313 = vmul.f32 %v1308, %v1312
        %vm1314 = vweird.f32 %v1292
        %vm1315 = vweird.f32 %v1308
        %vm1316 = vmor %vm1314, %vm1315
        %v1317 = vsel %vm1316, %v1308, %v1313
        %v1318 = vrsqrt.pop %v1293
        %v1319 = vmul.f32 %v1318, %v1293
        %v1320 = vmul.f32 %v1319, %v1318
        %v1321 = vmul.f32 0.5, %v1320
        %v1322 = vsub.f32 1.5, %v1321
        %v1323 = vmul.f32 %v1318, %v1322
        %vm1324 = vweird.f32 %v1293
        %vm1325 = vweird.f32 %v1318
        %vm1326 = vmor %vm1324, %vm1325
        %v1327 = vsel %vm1326, %v1318, %v1323
        %v1328 = vrsqrt.pop %v1294
        %v1329 = vmul.f32 %v1328, %v1294
        %v1330 = vmul.f32 %v1329, %v1328
        %v1331 = vmul.f32 0.5, %v1330
        %v1332 = vsub.f32 1.5, %v1331
        %v1333 = vmul.f32 %v1328, %v1332
        %vm1334 = vweird.f32 %v1294
        %vm1335 = vweird.f32 %v1328
        %vm1336 = vmor %vm1334, %vm1335
        %v1337 = vsel %vm1336, %v1328, %v1333
        %v1338 = vrsqrt.pop %v1295
        %v1339 = vmul.f32 %v1338, %v1295
        %v1340 = vmul.f32 %v1339, %v1338
        %v1341 = vmul.f32 0.5, %v1340
        %v1342 = vsub.f32 1.5, %v1341
        %v1343 = vmul.f32 %v1338, %v1342
        %vm1344 = vweird.f32 %v1295
        %vm1345 = vweird.f32 %v1338
        %vm1346 = vmor %vm1344, %vm1345
        %v1347 = vsel %vm1346, %v1338, %v1343
        %v1348 = vrsqrt.pop %v1296
        %v1349 = vmul.f32 %v1348, %v1296
        %v1350 = vmul.f32 %v1349, %v1348
        %v1351 = vmul.f32 0.5, %v1350
        %v1352 = vsub.f32 1.5, %v1351
        %v1353 = vmul.f32 %v1348, %v1352
        %vm1354 = vweird.f32 %v1296
        %vm1355 = vweird.f32 %v1348
        %vm1356 = vmor %vm1354, %vm1355
        %v1357 = vsel %vm1356, %v1348, %v1353
        %v1358 = vrsqrt.pop %v1297
        %v1359 = vmul.f32 %v1358, %v1297
        %v1360 = vmul.f32 %v1359, %v1358
        %v1361 = vmul.f32 0.5, %v1360
        %v1362 = vsub.f32 1.5, %v1361
        %v1363 = vmul.f32 %v1358, %v1362
        %vm1364 = vweird.f32 %v1297
        %vm1365 = vweird.f32 %v1358
        %vm1366 = vmor %vm1364, %vm1365
        %v1367 = vsel %vm1366, %v1358, %v1363
        %v1368 = vrsqrt.pop %v1298
        %v1369 = vmul.f32 %v1368, %v1298
        %v1370 = vmul.f32 %v1369, %v1368
        %v1371 = vmul.f32 0.5, %v1370
        %v1372 = vsub.f32 1.5, %v1371
        %v1373 = vmul.f32 %v1368, %v1372
        %vm1374 = vweird.f32 %v1298
        %vm1375 = vweird.f32 %v1368
        %vm1376 = vmor %vm1374, %vm1375
        %v1377 = vsel %vm1376, %v1368, %v1373
        %v1378 = vrsqrt.pop %v1299
        %v1379 = vmul.f32 %v1378, %v1299
        %v1380 = vmul.f32 %v1379, %v1378
        %v1381 = vmul.f32 0.5, %v1380
        %v1382 = vsub.f32 1.5, %v1381
        %v1383 = vmul.f32 %v1378, %v1382
        %vm1384 = vweird.f32 %v1299
        %vm1385 = vweird.f32 %v1378
        %vm1386 = vmor %vm1384, %vm1385
        %v1387 = vsel %vm1386, %v1378, %v1383
        %v1388 = vrsqrt.pop %v1300
        %v1389 = vmul.f32 %v1388, %v1300
        %v1390 = vmul.f32 %v1389, %v1388
        %v1391 = vmul.f32 0.5, %v1390
        %v1392 = vsub.f32 1.5, %v1391
        %v1393 = vmul.f32 %v1388, %v1392
        %vm1394 = vweird.f32 %v1300
        %vm1395 = vweird.f32 %v1388
        %vm1396 = vmor %vm1394, %vm1395
        %v1397 = vsel %vm1396, %v1388, %v1393
        %v1398 = vrsqrt.pop %v1301
        %v1399 = vmul.f32 %v1398, %v1301
        %v1400 = vmul.f32 %v1399, %v1398
        %v1401 = vmul.f32 0.5, %v1400
        %v1402 = vsub.f32 1.5, %v1401
        %v1403 = vmul.f32 %v1398, %v1402
        %vm1404 = vweird.f32 %v1301
        %vm1405 = vweird.f32 %v1398
        %vm1406 = vmor %vm1404, %vm1405
        %v1407 = vsel %vm1406, %v1398, %v1403
        %v1408 = vrsqrt.pop %v1302
        %v1409 = vmul.f32 %v1408, %v1302
        %v1410 = vmul.f32 %v1409, %v1408
        %v1411 = vmul.f32 0.5, %v1410
        %v1412 = vsub.f32 1.5, %v1411
        %v1413 = vmul.f32 %v1408, %v1412
        %vm1414 = vweird.f32 %v1302
        %vm1415 = vweird.f32 %v1408
        %vm1416 = vmor %vm1414, %vm1415
        %v1417 = vsel %vm1416, %v1408, %v1413
        %v1418 = vrsqrt.pop %v1303
        %v1419 = vmul.f32 %v1418, %v1303
        %v1420 = vmul.f32 %v1419, %v1418
        %v1421 = vmul.f32 0.5, %v1420
        %v1422 = vsub.f32 1.5, %v1421
        %v1423 = vmul.f32 %v1418, %v1422
        %vm1424 = vweird.f32 %v1303
        %vm1425 = vweird.f32 %v1418
        %vm1426 = vmor %vm1424, %vm1425
        %v1427 = vsel %vm1426, %v1418, %v1423
        %v1428 = vrsqrt.pop %v1304
        %v1429 = vmul.f32 %v1428, %v1304
        %v1430 = vmul.f32 %v1429, %v1428
        %v1431 = vmul.f32 0.5, %v1430
        %v1432 = vsub.f32 1.5, %v1431
        %v1433 = vmul.f32 %v1428, %v1432
        %vm1434 = vweird.f32 %v1304
        %vm1435 = vweird.f32 %v1428
        %vm1436 = vmor %vm1434, %vm1435
        %v1437 = vsel %vm1436, %v1428, %v1433
        %v1438 = vrsqrt.pop %v1305
        %v1439 = vmul.f32 %v1438, %v1305
        %v1440 = vmul.f32 %v1439, %v1438
        %v1441 = vmul.f32 0.5, %v1440
        %v1442 = vsub.f32 1.5, %v1441
        %v1443 = vmul.f32 %v1438, %v1442
        %vm1444 = vweird.f32 %v1305
        %vm1445 = vweird.f32 %v1438
        %vm1446 = vmor %vm1444, %vm1445
        %v1447 = vsel %vm1446, %v1438, %v1443
        %v1448 = vrsqrt.pop %v1306
        %v1449 = vmul.f32 %v1448, %v1306
        %v1450 = vmul.f32 %v1449, %v1448
        %v1451 = vmul.f32 0.5, %v1450
        %v1452 = vsub.f32 1.5, %v1451
        %v1453 = vmul.f32 %v1448, %v1452
        %vm1454 = vweird.f32 %v1306
        %vm1455 = vweird.f32 %v1448
        %vm1456 = vmor %vm1454, %vm1455
        %v1457 = vsel %vm1456, %v1448, %v1453
        %v1458 = vrsqrt.pop %v1307
        %v1459 = vmul.f32 %v1458, %v1307
        %v1460 = vmul.f32 %v1459, %v1458
        %v1461 = vmul.f32 0.5, %v1460
        %v1462 = vsub.f32 1.5, %v1461
        %v1463 = vmul.f32 %v1458, %v1462
        %vm1464 = vweird.f32 %v1307
        %vm1465 = vweird.f32 %v1458
        %vm1466 = vmor %vm1464, %vm1465
        %v1467 = vsel %vm1466, %v1458, %v1463
        %v1468 = vmul.f32 %v1276, %v1317
        %v1469 = vmul.f32 %v1277, %v1327
        %v1470 = vmul.f32 %v1278, %v1337
        %v1471 = vmul.f32 %v1279, %v1347
        %v1472 = vmul.f32 %v1280, %v1357
        %v1473 = vmul.f32 %v1281, %v1367
        %v1474 = vmul.f32 %v1282, %v1377
        %v1475 = vmul.f32 %v1283, %v1387
        %v1476 = vmul.f32 %v1284, %v1397
        %v1477 = vmul.f32 %v1285, %v1407
        %v1478 = vmul.f32 %v1286, %v1417
        %v1479 = vmul.f32 %v1287, %v1427
        %v1480 = vmul.f32 %v1288, %v1437
        %v1481 = vmul.f32 %v1289, %v1447
        %v1482 = vmul.f32 %v1290, %v1457
        %v1483 = vmul.f32 %v1291, %v1467
        %v1485 = vperm.slane %v1006, 0
        %v1487 = vmul.f32 %v1468, %v1485
        %v1488 = vmul.f32 %v1469, %v1485
        %v1489 = vmul.f32 %v1470, %v1485
        %v1490 = vmul.f32 %v1471, %v1485
        %v1491 = vmul.f32 %v1472, %v1485
        %v1492 = vmul.f32 %v1473, %v1485
        %v1493 = vmul.f32 %v1474, %v1485
        %v1494 = vmul.f32 %v1475, %v1485
        %v1495 = vmul.f32 %v1476, %v1485
        %v1496 = vmul.f32 %v1477, %v1485
        %v1497 = vmul.f32 %v1478, %v1485
        %v1498 = vmul.f32 %v1479, %v1485
        %v1499 = vmul.f32 %v1480, %v1485
        %v1500 = vmul.f32 %v1481, %v1485
        %v1501 = vmul.f32 %v1482, %v1485
        %v1502 = vmul.f32 %v1483, %v1485
        %v1504 = vperm.slane %v1007, 0
        %v1506 = vadd.f32 %v1487, %v1504
        %v1507 = vadd.f32 %v1488, %v1504
        %v1508 = vadd.f32 %v1489, %v1504
        %v1509 = vadd.f32 %v1490, %v1504
        %v1510 = vadd.f32 %v1491, %v1504
        %v1511 = vadd.f32 %v1492, %v1504
        %v1512 = vadd.f32 %v1493, %v1504
        %v1513 = vadd.f32 %v1494, %v1504
        %v1514 = vadd.f32 %v1495, %v1504
        %v1515 = vadd.f32 %v1496, %v1504
        %v1516 = vadd.f32 %v1497, %v1504
        %v1517 = vadd.f32 %v1498, %v1504
        %v1518 = vadd.f32 %v1499, %v1504
        %v1519 = vadd.f32 %v1500, %v1504
        %v1520 = vadd.f32 %v1501, %v1504
        %v1521 = vadd.f32 %v1502, %v1504
        %v1522 = vmax.f32 %v1506, 0.0
        %v1523 = vmax.f32 %v1507, 0.0
        %v1524 = vmax.f32 %v1508, 0.0
        %v1525 = vmax.f32 %v1509, 0.0
        %v1526 = vmax.f32 %v1510, 0.0
        %v1527 = vmax.f32 %v1511, 0.0
        %v1528 = vmax.f32 %v1512, 0.0
        %v1529 = vmax.f32 %v1513, 0.0
        %v1530 = vmax.f32 %v1514, 0.0
        %v1531 = vmax.f32 %v1515, 0.0
        %v1532 = vmax.f32 %v1516, 0.0
        %v1533 = vmax.f32 %v1517, 0.0
        %v1534 = vmax.f32 %v1518, 0.0
        %v1535 = vmax.f32 %v1519, 0.0
        %v1536 = vmax.f32 %v1520, 0.0
        %v1537 = vmax.f32 %v1521, 0.0
        %v1538 = vadd.f32 %v1522, %v519
        %v1539 = vadd.f32 %v1523, %v521
        %v1540 = vadd.f32 %v1524, %v524
        %v1541 = vadd.f32 %v1525, %v526
        %v1542 = vadd.f32 %v1526, %v529
        %v1543 = vadd.f32 %v1527, %v531
        %v1544 = vadd.f32 %v1528, %v534
        %v1545 = vadd.f32 %v1529, %v536
        %v1546 = vadd.f32 %v1530, %v539
        %v1547 = vadd.f32 %v1531, %v541
        %v1548 = vadd.f32 %v1532, %v544
        %v1549 = vadd.f32 %v1533, %v546
        %v1550 = vadd.f32 %v1534, %v549
        %v1551 = vadd.f32 %v1535, %v551
        %v1552 = vadd.f32 %v1536, %v554
        %v1553 = vadd.f32 %v1537, %v556
        %1554 = vst [vmem:[%s326] sm:$0xff] %v1538
        %1555 = vst [vmem:[%s326 + $0x8] sm:$0xff] %v1539
        %1556 = vst [vmem:[%s326 + $0x10] sm:$0xff] %v1540
        %1557 = vst [vmem:[%s326 + $0x18] sm:$0xff] %v1541
        %1558 = vst [vmem:[%s326 + $0x20] sm:$0xff] %v1542
        %1559 = vst [vmem:[%s326 + $0x28] sm:$0xff] %v1543
        %1560 = vst [vmem:[%s326 + $0x30] sm:$0xff] %v1544
        %1561 = vst [vmem:[%s326 + $0x38] sm:$0xff] %v1545
        %1562 = vst [vmem:[%s326 + $0x40] sm:$0xff] %v1546
        %1563 = vst [vmem:[%s326 + $0x48] sm:$0xff] %v1547
        %1564 = vst [vmem:[%s326 + $0x50] sm:$0xff] %v1548
        %1565 = vst [vmem:[%s326 + $0x58] sm:$0xff] %v1549
        %1566 = vst [vmem:[%s326 + $0x60] sm:$0xff] %v1550
        %1567 = vst [vmem:[%s326 + $0x68] sm:$0xff] %v1551
        %1568 = vst [vmem:[%s326 + $0x70] sm:$0xff] %v1552
        %1569 = vst [vmem:[%s326 + $0x78] sm:$0xff] %v1553
        %s1570 = sand.u32 %s225, 1
        %s1571 = scalar_lea.sflag [#allocation3], %s1570
        %s1572 = sand.u32 %s225, 1
        %s1573 = smul.addr %s1572, 128
        %s1574 = scalar_lea.vmem [#allocation2], %s1573
        // Predicated region
        $region57: #{resblock_forward.1} parent=55 // pred_check
          %p1575 = pneg %p235
        $region58: #{resblock_forward.1} parent=55 // pred_check_branch
          %1577 = sbr.rel (%p1575) target = $region60
        $region59: #{resblock_forward.1} parent=55 // pred_region
          %s1578 = smul.u32 16, %s23
          %1580 = vsyncadd %s1571, 0
          %s1581 = smul.addr %s1578, 8
          %s1582 = scalar_lea.hbm %s9, %s1581
          %s1583 = sshll.u32 %s1574, 4
          %s1584 = int_to_ptr.vmem [resolvable:$true] %s1583
          %s1585 = sshll.u32 %s1582, 4
          %s1586 = int_to_ptr.hbm [resolvable:$true] %s1585
          %1591 = dma.vmem_to_hbm [thread:$0]  %s1584, 2048, %s1586, %s1571, 128, 128, 8
        $region60: #{resblock_forward.1} parent=55 // pred_fallthru
          _
      $region56: #{resblock_forward.1} parent=5 // pred_fallthru
        _
      %p1592 = scmp.le.s32.totalorder 2, %s18
      // Predicated region
      $region61: #{resblock_forward.1} parent=5 // pred_check
        %p1593 = pneg %p1592
      $region62: #{resblock_forward.1} parent=5 // pred_check_branch
        %1595 = sbr.rel (%p1593) target = $region64
      $region63: #{resblock_forward.1} parent=5 // pred_region
        %s1596 = ssub.s32 %s18, 2
        // Predicated region
        $region65: #{resblock_forward.1} parent=63 // pred_check
          %p1597 = pneg %p241
        $region66: #{resblock_forward.1} parent=63 // pred_check_branch
          %1599 = sbr.rel (%p1597) target = $region68
        $region67: #{resblock_forward.1} parent=63 // pred_region
          %s1600 = sand.u32 %s226, 1
          %s1601 = scalar_lea.sflag [#allocation3], %s1600
          %s1602 = sand.u32 %s226, 1
          %s1603 = smul.addr %s1602, 128
          %s1604 = scalar_lea.vmem [#allocation2], %s1603
          %1606 = dma.done %s1601, 2048
        $region68: #{resblock_forward.1} parent=63 // pred_fallthru
          _
      $region64: #{resblock_forward.1} parent=5 // pred_fallthru
        _
    $region6: #{resblock_forward.1} parent=1 // loop_footer
      %s22 = sadd.s32 1, %s18
    $region7: #{resblock_forward.1} parent=1 // loop_footer_branch
      %17 = sbr.rel target = $region3
    $region8: #{resblock_forward.1} parent=1 // loop_exit
      _
    %1607 = vsyncpa [#allocation3], 1
    %s1608 = scalar_lea.sflag [#allocation3], 1
    %1609 = vsyncpa %s1608, 1

</llo_original>
